<compile_context>
chip_gen: v6e
topology: v6e:2x2x1
jax: 0.10.0
libtpu: 0.0.40
codegen_flags: <defaults>
</compile_context>

<pallas_src>
import functools

import jax
import jax.numpy as jnp
from jax import lax
from jax.experimental import pallas as pl
from jax.experimental.pallas import tpu as pltpu


# --------------------------------------------------------------------------- #
# Kernel: per-lane complex multiply-accumulate over Cin.
# --------------------------------------------------------------------------- #
def _spectral_mul_kernel(ar_ref, ai_ref, wr_ref, wi_ref, or_ref, oi_ref):
    # ar/ai: (Cin, B, Lt)   real / imag of the packed Fourier modes (f32)
    # wr/wi: (Cin, Ct, Lt)  real / imag of the packed spectral weights (f32 or bf16)
    # or/oi: (B, Ct, Lt)    f32
    cin, b, lt = ar_ref.shape
    ct = wr_ref.shape[1]

    def body(i, carry):
        acc_r, acc_i = carry
        a_r = ar_ref[i][:, None, :]                        # (B, 1, Lt)
        a_i = ai_ref[i][:, None, :]
        w_r = wr_ref[i].astype(jnp.float32)[None, :, :]    # (1, Ct, Lt)
        w_i = wi_ref[i].astype(jnp.float32)[None, :, :]
        acc_r = acc_r + (a_r * w_r - a_i * w_i)
        acc_i = acc_i + (a_r * w_i + a_i * w_r)
        return acc_r, acc_i

    zeros = jnp.zeros((b, ct, lt), jnp.float32)
    # Bounded unroll: keeps LLO scheduling visibility without blowing live ranges
    # when Cin is large (32-64).
    acc_r, acc_i = lax.fori_loop(0, cin, body, (zeros, zeros), unroll=min(cin, 8))
    or_ref[...] = acc_r
    oi_ref[...] = acc_i


# --------------------------------------------------------------------------- #
# Generation-aware tile selection.
# --------------------------------------------------------------------------- #
def _vmem_capacity_bytes():
    try:
        return int(pltpu.get_tpu_info().vmem_capacity_bytes)
    except Exception:
        return 64 << 20  # conservative fallback (v7x-sized per-TC VMEM)


def _choose_tiles(cin, cout_p, b, L_p, w_itemsize, vmem_cap):
    """Pick (cout_tile, lane_tile); cout_p is a multiple of 8, L_p of 128."""
    acc_budget = 8 * 1024  # f32 elems per accumulator part (~8 vregs) -> no spills

    def tile_vmem_bytes(ct, lt):
        # 4 inputs + 2 outputs, each double-buffered by the auto pipeline.
        a_bytes = 2 * 2 * cin * b * lt * 4
        w_bytes = 2 * 2 * cin * ct * lt * w_itemsize
        o_bytes = 2 * 2 * b * ct * lt * 4
        return a_bytes + w_bytes + o_bytes

    budget = int(vmem_cap * 0.7)  # headroom for Mosaic internal scratch

    ct = 8
    for c in range(8, cout_p + 1, 8):
        if (cout_p % c == 0 and b * c * 128 <= acc_budget
                and tile_vmem_bytes(c, 128) <= budget):
            ct = c

    def pick_lt(max_lt):
        lt, t = 128, 128
        while t <= min(L_p, max_lt):
            if (L_p % t == 0 and b * ct * t <= acc_budget
                    and tile_vmem_bytes(ct, t) <= budget):
                lt = t
            t += 128
        return lt

    lt = pick_lt(L_p)

    # Ensure >=2 grid steps on a parallel axis so v7x's two TensorCores both get
    # work (negligible one-extra-step cost on single-TC v5e/v6e).
    if (L_p // lt) * (cout_p // ct) == 1:
        if L_p >= 256:
            lt = pick_lt(L_p - 128)          # force lane split
        elif cout_p >= 16:
            best = 8
            for c in range(8, cout_p, 8):    # largest mult-of-8 divisor < cout_p
                if cout_p % c == 0:
                    best = c
            ct = best
    return ct, lt


def _pallas_compl_mul(a_r, a_i, w_r, w_i):
    """a_*: (Cin, B, L_p) f32, w_*: (Cin, Cout_p, L_p) -> two (B, Cout_p, L_p) f32."""
    cin, b, L_p = a_r.shape
    cout_p = w_r.shape[1]
    w_itemsize = jnp.dtype(w_r.dtype).itemsize

    vmem_cap = _vmem_capacity_bytes()
    ct, lt = _choose_tiles(cin, cout_p, b, L_p, w_itemsize, vmem_cap)

    # Lane axis outer, Cout axis inner: the activation block index (0, 0, l) is
    # constant along the innermost axis, so Pallas skips its re-DMA and the
    # activations are fetched from HBM exactly once.
    grid = (L_p // lt, cout_p // ct)

    a_spec = pl.BlockSpec((cin, b, lt), lambda l, j: (0, 0, l))
    w_spec = pl.BlockSpec((cin, ct, lt), lambda l, j: (0, j, l))
    o_spec = pl.BlockSpec((b, ct, lt), lambda l, j: (0, j, l))

    out_shape = (
        jax.ShapeDtypeStruct((b, cout_p, L_p), jnp.float32),
        jax.ShapeDtypeStruct((b, cout_p, L_p), jnp.float32),
    )

    flops = 8 * b * cin * cout_p * L_p
    bytes_accessed = (2 * cin * b * L_p * 4            # activations (r + i)
                      + 2 * cin * cout_p * L_p * w_itemsize  # weights (r + i)
                      + 2 * b * cout_p * L_p * 4)      # outputs (r + i)

    return pl.pallas_call(
        _spectral_mul_kernel,
        out_shape=out_shape,
        grid=grid,
        in_specs=[a_spec, a_spec, w_spec, w_spec],
        out_specs=(o_spec, o_spec),
        compiler_params=pltpu.CompilerParams(
            dimension_semantics=("parallel", "parallel"),
            # 75% of physical per-TC VMEM: 96 MiB on v5e/v6e, 48 MiB on v7x.
            vmem_limit_bytes=int(vmem_cap * 3 // 4),
        ),
        cost_estimate=pl.CostEstimate(flops=flops, transcendentals=0,
                                      bytes_accessed=bytes_accessed),
    )(a_r, a_i, w_r, w_i)


# --------------------------------------------------------------------------- #
# Forward pass (jitted): FFT -> corner pack -> Pallas complex MAC -> scatter -> iFFT.
# --------------------------------------------------------------------------- #
def _forward_impl(x, w_r, w_i, *, m1, m2, m3, cout, cout_pad, L_pad):
    B, Cin, D1, D2, D3 = x.shape
    M = m1 * m2 * m3
    L = 4 * M
    D3r = D3 // 2 + 1
    # Deliberate behavior difference from PyTorch: overlapping corner slices would
    # silently double-write the scatter; reject them explicitly.
    assert 2 * m1 <= D1 and 2 * m2 <= D2 and m3 <= D3r, "modes too large for grid"

    # TODO(synk): FFT / inverse FFT have no Pallas primitive; done in plain JAX.
    x_ft = jnp.fft.rfftn(x, axes=(-3, -2, -1))  # (B, Cin, D1, D2, D3r) complex64

    corners = [
        x_ft[:, :, :m1, :m2, :m3],
        x_ft[:, :, -m1:, :m2, :m3],
        x_ft[:, :, :m1, -m2:, :m3],
        x_ft[:, :, -m1:, -m2:, :m3],
    ]
    # Split real/imag on the small corner slices first, then stack/reshape in f32.
    a_r = jnp.stack([jnp.real(c) for c in corners], axis=2).reshape(B, Cin, L)
    a_i = jnp.stack([jnp.imag(c) for c in corners], axis=2).reshape(B, Cin, L)
    if L_pad > L:
        pad = ((0, 0), (0, 0), (0, L_pad - L))
        a_r = jnp.pad(a_r, pad)
        a_i = jnp.pad(a_i, pad)
    a_r = jnp.transpose(a_r, (1, 0, 2)).astype(jnp.float32)  # (Cin, B, L_pad)
    a_i = jnp.transpose(a_i, (1, 0, 2)).astype(jnp.float32)

    out_r, out_i = _pallas_compl_mul(a_r, a_i, w_r, w_i)     # (B, Cout_pad, L_pad)
    out_c = (out_r[:, :cout, :L] + 1j * out_i[:, :cout, :L]).astype(jnp.complex64)
    out_c = out_c.reshape(B, cout, 4, m1, m2, m3)

    # Scatter corner blocks into the full spectrum (rest stays zero).
    out_ft = jnp.zeros((B, cout, D1, D2, D3r), dtype=jnp.complex64)
    out_ft = out_ft.at[:, :, :m1, :m2, :m3].set(out_c[:, :, 0])
    out_ft = out_ft.at[:, :, -m1:, :m2, :m3].set(out_c[:, :, 1])
    out_ft = out_ft.at[:, :, :m1, -m2:, :m3].set(out_c[:, :, 2])
    out_ft = out_ft.at[:, :, -m1:, -m2:, :m3].set(out_c[:, :, 3])

    return jnp.fft.irfftn(out_ft, s=(D1, D2, D3), axes=(-3, -2, -1)).astype(jnp.float32)


class SpectralConv3d:
    """JAX re-implementation of the PyTorch SpectralConv3d module."""

    def __init__(self, in_channels, out_channels, modes1, modes2, modes3, key,
                 weights_dtype=jnp.float32):
        # weights_dtype=jnp.bfloat16 halves weight HBM traffic (recommended for the
        # bandwidth-bound small-batch regime on v5e/v6e); kernel upcasts to f32.
        self.in_channels = in_channels
        self.out_channels = out_channels
        self.modes1 = modes1
        self.modes2 = modes2
        self.modes3 = modes3
        scale = 1.0 / (in_channels * out_channels)
        wshape = (in_channels, out_channels, modes1, modes2, modes3)

        keys = jax.random.split(key, 8)
        # torch.rand(..., dtype=torch.cfloat): real and imag both uniform in [0, 1)
        self.weights = []  # 4 complex64 arrays of shape wshape (kept for ref check)
        for i in range(4):
            wr = scale * jax.random.uniform(keys[2 * i], wshape, dtype=jnp.float32)
            wi = scale * jax.random.uniform(keys[2 * i + 1], wshape, dtype=jnp.float32)
            self.weights.append(wr + 1j * wi)

        # Pre-pack weights once: corners folded into the lane axis -> (Cin, Cout, 4M),
        # padded to lane-dense (x128) and sublane-dense (Cout x8) tiles.
        M = modes1 * modes2 * modes3
        L = 4 * M
        self.L = L
        self.L_pad = -(-L // 128) * 128
        self.cout_pad = -(-out_channels // 8) * 8
        w = jnp.stack(self.weights, axis=2).reshape(in_channels, out_channels, L)
        pad = ((0, 0), (0, self.cout_pad - out_channels), (0, self.L_pad - L))
        self.w_r = jnp.pad(jnp.real(w), pad).astype(weights_dtype)
        self.w_i = jnp.pad(jnp.imag(w), pad).astype(weights_dtype)

        self._forward = jax.jit(functools.partial(
            _forward_impl, m1=modes1, m2=modes2, m3=modes3,
            cout=out_channels, cout_pad=self.cout_pad, L_pad=self.L_pad))

    def __call__(self, x):
        # x: (B, Cin, D1, D2, D3) float32
        return self._forward(x, self.w_r, self.w_i)


# --------------------------------------------------------------------------- #
# Pure-JAX reference (complex einsum) for the sanity check.
# --------------------------------------------------------------------------- #
def _reference_forward(module, x):
    B, Cin, D1, D2, D3 = x.shape
    m1, m2, m3 = module.modes1, module.modes2, module.modes3
    Cout = module.out_channels
    x_ft = jnp.fft.rfftn(x, axes=(-3, -2, -1))
    out_ft = jnp.zeros((B, Cout, D1, D2, D3 // 2 + 1), dtype=jnp.complex64)
    cm = lambda inp, w: jnp.einsum('bixyz,ioxyz->boxyz', inp, w)
    out_ft = out_ft.at[:, :, :m1, :m2, :m3].set(cm(x_ft[:, :, :m1, :m2, :m3], module.weights[0]))
    out_ft = out_ft.at[:, :, -m1:, :m2, :m3].set(cm(x_ft[:, :, -m1:, :m2, :m3], module.weights[1]))
    out_ft = out_ft.at[:, :, :m1, -m2:, :m3].set(cm(x_ft[:, :, :m1, -m2:, :m3], module.weights[2]))
    out_ft = out_ft.at[:, :, -m1:, -m2:, :m3].set(cm(x_ft[:, :, -m1:, -m2:, :m3], module.weights[3]))
    return jnp.fft.irfftn(out_ft, s=(D1, D2, D3), axes=(-3, -2, -1)).astype(jnp.float32)


if __name__ == "__main__":
    key = jax.random.PRNGKey(0)
    k_x, k_w = jax.random.split(key)

    B, Cin, Cout = 2, 4, 4
    D1 = D2 = D3 = 16
    modes1 = modes2 = modes3 = 4

    x = jax.random.normal(k_x, (B, Cin, D1, D2, D3), dtype=jnp.float32)

    module = SpectralConv3d(Cin, Cout, modes1, modes2, modes3, k_w)

    out = module(x)
    out = jax.block_until_ready(out)

    ref = jax.block_until_ready(_reference_forward(module, x))
    assert out.shape == (B, Cout, D1, D2, D3)
    assert jnp.allclose(out, ref, atol=1e-5, rtol=1e-5), "mismatch vs pure-JAX reference"

    print("KERNEL_OK")
</pallas_src>

<mosaic_0001>
module attributes {stable_mosaic.version = 11 : i64} {
  func.func @_spectral_mul_kernel(%arg0: i32, %arg1: i32, %arg2: memref<4x2x128xf32, #tpu.memory_space<vmem>>, %arg3: memref<4x2x128xf32, #tpu.memory_space<vmem>>, %arg4: memref<4x8x128xf32, #tpu.memory_space<vmem>>, %arg5: memref<4x8x128xf32, #tpu.memory_space<vmem>>, %arg6: memref<2x8x128xf32, #tpu.memory_space<vmem>>, %arg7: memref<2x8x128xf32, #tpu.memory_space<vmem>>) attributes {dimension_semantics = [#tpu.dimension_semantics<parallel>, #tpu.dimension_semantics<parallel>], iteration_bounds = array<i64: 2, 1>, scalar_prefetch = 0 : i64, scratch_operands = 0 : i64, tpu.core_type = #tpu.core_type<tc>, window_params = [{transform_indices = @transform_0, window_bounds = array<i64: 4, 2, 128>}, {transform_indices = @transform_1, window_bounds = array<i64: 4, 2, 128>}, {transform_indices = @transform_2, window_bounds = array<i64: 4, 8, 128>}, {transform_indices = @transform_3, window_bounds = array<i64: 4, 8, 128>}, {transform_indices = @transform_4, window_bounds = array<i64: 2, 8, 128>}, {transform_indices = @transform_5, window_bounds = array<i64: 2, 8, 128>}]} {
    %cst = arith.constant 0.000000e+00 : f32
    %0 = vector.broadcast %cst : f32 to vector<2x8x128xf32>
    %c0_i32 = arith.constant 0 : i32
    %1 = arith.index_cast %c0_i32 : i32 to index
    %c0 = arith.constant 0 : index
    %c0_0 = arith.constant 0 : index
    %2 = vector.load %arg2[%1, %c0, %c0_0] : memref<4x2x128xf32, #tpu.memory_space<vmem>>, vector<1x2x128xf32>
    %3 = vector.shape_cast %2 : vector<1x2x128xf32> to vector<2x128xf32>
    %4 = vector.shape_cast %3 : vector<2x128xf32> to vector<2x1x128xf32>
    %5 = arith.index_cast %c0_i32 : i32 to index
    %c0_1 = arith.constant 0 : index
    %c0_2 = arith.constant 0 : index
    %6 = vector.load %arg3[%5, %c0_1, %c0_2] : memref<4x2x128xf32, #tpu.memory_space<vmem>>, vector<1x2x128xf32>
    %7 = vector.shape_cast %6 : vector<1x2x128xf32> to vector<2x128xf32>
    %8 = vector.shape_cast %7 : vector<2x128xf32> to vector<2x1x128xf32>
    %9 = arith.index_cast %c0_i32 : i32 to index
    %c0_3 = arith.constant 0 : index
    %c0_4 = arith.constant 0 : index
    %10 = vector.load %arg4[%9, %c0_3, %c0_4] : memref<4x8x128xf32, #tpu.memory_space<vmem>>, vector<1x8x128xf32>
    %11 = vector.shape_cast %10 : vector<1x8x128xf32> to vector<8x128xf32>
    %12 = vector.shape_cast %11 : vector<8x128xf32> to vector<1x8x128xf32>
    %13 = arith.index_cast %c0_i32 : i32 to index
    %c0_5 = arith.constant 0 : index
    %c0_6 = arith.constant 0 : index
    %14 = vector.load %arg5[%13, %c0_5, %c0_6] : memref<4x8x128xf32, #tpu.memory_space<vmem>>, vector<1x8x128xf32>
    %15 = vector.shape_cast %14 : vector<1x8x128xf32> to vector<8x128xf32>
    %16 = vector.shape_cast %15 : vector<8x128xf32> to vector<1x8x128xf32>
    %17 = vector.broadcast %4 : vector<2x1x128xf32> to vector<2x8x128xf32>
    %18 = vector.broadcast %12 : vector<1x8x128xf32> to vector<2x8x128xf32>
    %19 = arith.mulf %17, %18 : vector<2x8x128xf32>
    %20 = vector.broadcast %8 : vector<2x1x128xf32> to vector<2x8x128xf32>
    %21 = vector.broadcast %16 : vector<1x8x128xf32> to vector<2x8x128xf32>
    %22 = arith.mulf %20, %21 : vector<2x8x128xf32>
    %23 = arith.subf %19, %22 : vector<2x8x128xf32>
    %24 = arith.addf %0, %23 : vector<2x8x128xf32>
    %25 = vector.broadcast %4 : vector<2x1x128xf32> to vector<2x8x128xf32>
    %26 = vector.broadcast %16 : vector<1x8x128xf32> to vector<2x8x128xf32>
    %27 = arith.mulf %25, %26 : vector<2x8x128xf32>
    %28 = vector.broadcast %8 : vector<2x1x128xf32> to vector<2x8x128xf32>
    %29 = vector.broadcast %12 : vector<1x8x128xf32> to vector<2x8x128xf32>
    %30 = arith.mulf %28, %29 : vector<2x8x128xf32>
    %31 = arith.addf %27, %30 : vector<2x8x128xf32>
    %32 = arith.addf %0, %31 : vector<2x8x128xf32>
    %c1_i32 = arith.constant 1 : i32
    %33 = arith.index_cast %c1_i32 : i32 to index
    %c0_7 = arith.constant 0 : index
    %c0_8 = arith.constant 0 : index
    %34 = vector.load %arg2[%33, %c0_7, %c0_8] : memref<4x2x128xf32, #tpu.memory_space<vmem>>, vector<1x2x128xf32>
    %35 = vector.shape_cast %34 : vector<1x2x128xf32> to vector<2x128xf32>
    %36 = vector.shape_cast %35 : vector<2x128xf32> to vector<2x1x128xf32>
    %37 = arith.index_cast %c1_i32 : i32 to index
    %c0_9 = arith.constant 0 : index
    %c0_10 = arith.constant 0 : index
    %38 = vector.load %arg3[%37, %c0_9, %c0_10] : memref<4x2x128xf32, #tpu.memory_space<vmem>>, vector<1x2x128xf32>
    %39 = vector.shape_cast %38 : vector<1x2x128xf32> to vector<2x128xf32>
    %40 = vector.shape_cast %39 : vector<2x128xf32> to vector<2x1x128xf32>
    %41 = arith.index_cast %c1_i32 : i32 to index
    %c0_11 = arith.constant 0 : index
    %c0_12 = arith.constant 0 : index
    %42 = vector.load %arg4[%41, %c0_11, %c0_12] : memref<4x8x128xf32, #tpu.memory_space<vmem>>, vector<1x8x128xf32>
    %43 = vector.shape_cast %42 : vector<1x8x128xf32> to vector<8x128xf32>
    %44 = vector.shape_cast %43 : vector<8x128xf32> to vector<1x8x128xf32>
    %45 = arith.index_cast %c1_i32 : i32 to index
    %c0_13 = arith.constant 0 : index
    %c0_14 = arith.constant 0 : index
    %46 = vector.load %arg5[%45, %c0_13, %c0_14] : memref<4x8x128xf32, #tpu.memory_space<vmem>>, vector<1x8x128xf32>
    %47 = vector.shape_cast %46 : vector<1x8x128xf32> to vector<8x128xf32>
    %48 = vector.shape_cast %47 : vector<8x128xf32> to vector<1x8x128xf32>
    %49 = vector.broadcast %36 : vector<2x1x128xf32> to vector<2x8x128xf32>
    %50 = vector.broadcast %44 : vector<1x8x128xf32> to vector<2x8x128xf32>
    %51 = arith.mulf %49, %50 : vector<2x8x128xf32>
    %52 = vector.broadcast %40 : vector<2x1x128xf32> to vector<2x8x128xf32>
    %53 = vector.broadcast %48 : vector<1x8x128xf32> to vector<2x8x128xf32>
    %54 = arith.mulf %52, %53 : vector<2x8x128xf32>
    %55 = arith.subf %51, %54 : vector<2x8x128xf32>
    %56 = arith.addf %24, %55 : vector<2x8x128xf32>
    %57 = vector.broadcast %36 : vector<2x1x128xf32> to vector<2x8x128xf32>
    %58 = vector.broadcast %48 : vector<1x8x128xf32> to vector<2x8x128xf32>
    %59 = arith.mulf %57, %58 : vector<2x8x128xf32>
    %60 = vector.broadcast %40 : vector<2x1x128xf32> to vector<2x8x128xf32>
    %61 = vector.broadcast %44 : vector<1x8x128xf32> to vector<2x8x128xf32>
    %62 = arith.mulf %60, %61 : vector<2x8x128xf32>
    %63 = arith.addf %59, %62 : vector<2x8x128xf32>
    %64 = arith.addf %32, %63 : vector<2x8x128xf32>
    %c2_i32 = arith.constant 2 : i32
    %65 = arith.index_cast %c2_i32 : i32 to index
    %c0_15 = arith.constant 0 : index
    %c0_16 = arith.constant 0 : index
    %66 = vector.load %arg2[%65, %c0_15, %c0_16] : memref<4x2x128xf32, #tpu.memory_space<vmem>>, vector<1x2x128xf32>
    %67 = vector.shape_cast %66 : vector<1x2x128xf32> to vector<2x128xf32>
    %68 = vector.shape_cast %67 : vector<2x128xf32> to vector<2x1x128xf32>
    %69 = arith.index_cast %c2_i32 : i32 to index
    %c0_17 = arith.constant 0 : index
    %c0_18 = arith.constant 0 : index
    %70 = vector.load %arg3[%69, %c0_17, %c0_18] : memref<4x2x128xf32, #tpu.memory_space<vmem>>, vector<1x2x128xf32>
    %71 = vector.shape_cast %70 : vector<1x2x128xf32> to vector<2x128xf32>
    %72 = vector.shape_cast %71 : vector<2x128xf32> to vector<2x1x128xf32>
    %73 = arith.index_cast %c2_i32 : i32 to index
    %c0_19 = arith.constant 0 : index
    %c0_20 = arith.constant 0 : index
    %74 = vector.load %arg4[%73, %c0_19, %c0_20] : memref<4x8x128xf32, #tpu.memory_space<vmem>>, vector<1x8x128xf32>
    %75 = vector.shape_cast %74 : vector<1x8x128xf32> to vector<8x128xf32>
    %76 = vector.shape_cast %75 : vector<8x128xf32> to vector<1x8x128xf32>
    %77 = arith.index_cast %c2_i32 : i32 to index
    %c0_21 = arith.constant 0 : index
    %c0_22 = arith.constant 0 : index
    %78 = vector.load %arg5[%77, %c0_21, %c0_22] : memref<4x8x128xf32, #tpu.memory_space<vmem>>, vector<1x8x128xf32>
    %79 = vector.shape_cast %78 : vector<1x8x128xf32> to vector<8x128xf32>
    %80 = vector.shape_cast %79 : vector<8x128xf32> to vector<1x8x128xf32>
    %81 = vector.broadcast %68 : vector<2x1x128xf32> to vector<2x8x128xf32>
    %82 = vector.broadcast %76 : vector<1x8x128xf32> to vector<2x8x128xf32>
    %83 = arith.mulf %81, %82 : vector<2x8x128xf32>
    %84 = vector.broadcast %72 : vector<2x1x128xf32> to vector<2x8x128xf32>
    %85 = vector.broadcast %80 : vector<1x8x128xf32> to vector<2x8x128xf32>
    %86 = arith.mulf %84, %85 : vector<2x8x128xf32>
    %87 = arith.subf %83, %86 : vector<2x8x128xf32>
    %88 = arith.addf %56, %87 : vector<2x8x128xf32>
    %89 = vector.broadcast %68 : vector<2x1x128xf32> to vector<2x8x128xf32>
    %90 = vector.broadcast %80 : vector<1x8x128xf32> to vector<2x8x128xf32>
    %91 = arith.mulf %89, %90 : vector<2x8x128xf32>
    %92 = vector.broadcast %72 : vector<2x1x128xf32> to vector<2x8x128xf32>
    %93 = vector.broadcast %76 : vector<1x8x128xf32> to vector<2x8x128xf32>
    %94 = arith.mulf %92, %93 : vector<2x8x128xf32>
    %95 = arith.addf %91, %94 : vector<2x8x128xf32>
    %96 = arith.addf %64, %95 : vector<2x8x128xf32>
    %c3_i32 = arith.constant 3 : i32
    %97 = arith.index_cast %c3_i32 : i32 to index
    %c0_23 = arith.constant 0 : index
    %c0_24 = arith.constant 0 : index
    %98 = vector.load %arg2[%97, %c0_23, %c0_24] : memref<4x2x128xf32, #tpu.memory_space<vmem>>, vector<1x2x128xf32>
    %99 = vector.shape_cast %98 : vector<1x2x128xf32> to vector<2x128xf32>
    %100 = vector.shape_cast %99 : vector<2x128xf32> to vector<2x1x128xf32>
    %101 = arith.index_cast %c3_i32 : i32 to index
    %c0_25 = arith.constant 0 : index
    %c0_26 = arith.constant 0 : index
    %102 = vector.load %arg3[%101, %c0_25, %c0_26] : memref<4x2x128xf32, #tpu.memory_space<vmem>>, vector<1x2x128xf32>
    %103 = vector.shape_cast %102 : vector<1x2x128xf32> to vector<2x128xf32>
    %104 = vector.shape_cast %103 : vector<2x128xf32> to vector<2x1x128xf32>
    %105 = arith.index_cast %c3_i32 : i32 to index
    %c0_27 = arith.constant 0 : index
    %c0_28 = arith.constant 0 : index
    %106 = vector.load %arg4[%105, %c0_27, %c0_28] : memref<4x8x128xf32, #tpu.memory_space<vmem>>, vector<1x8x128xf32>
    %107 = vector.shape_cast %106 : vector<1x8x128xf32> to vector<8x128xf32>
    %108 = vector.shape_cast %107 : vector<8x128xf32> to vector<1x8x128xf32>
    %109 = arith.index_cast %c3_i32 : i32 to index
    %c0_29 = arith.constant 0 : index
    %c0_30 = arith.constant 0 : index
    %110 = vector.load %arg5[%109, %c0_29, %c0_30] : memref<4x8x128xf32, #tpu.memory_space<vmem>>, vector<1x8x128xf32>
    %111 = vector.shape_cast %110 : vector<1x8x128xf32> to vector<8x128xf32>
    %112 = vector.shape_cast %111 : vector<8x128xf32> to vector<1x8x128xf32>
    %113 = vector.broadcast %100 : vector<2x1x128xf32> to vector<2x8x128xf32>
    %114 = vector.broadcast %108 : vector<1x8x128xf32> to vector<2x8x128xf32>
    %115 = arith.mulf %113, %114 : vector<2x8x128xf32>
    %116 = vector.broadcast %104 : vector<2x1x128xf32> to vector<2x8x128xf32>
    %117 = vector.broadcast %112 : vector<1x8x128xf32> to vector<2x8x128xf32>
    %118 = arith.mulf %116, %117 : vector<2x8x128xf32>
    %119 = arith.subf %115, %118 : vector<2x8x128xf32>
    %120 = arith.addf %88, %119 : vector<2x8x128xf32>
    %121 = vector.broadcast %100 : vector<2x1x128xf32> to vector<2x8x128xf32>
    %122 = vector.broadcast %112 : vector<1x8x128xf32> to vector<2x8x128xf32>
    %123 = arith.mulf %121, %122 : vector<2x8x128xf32>
    %124 = vector.broadcast %104 : vector<2x1x128xf32> to vector<2x8x128xf32>
    %125 = vector.broadcast %108 : vector<1x8x128xf32> to vector<2x8x128xf32>
    %126 = arith.mulf %124, %125 : vector<2x8x128xf32>
    %127 = arith.addf %123, %126 : vector<2x8x128xf32>
    %128 = arith.addf %96, %127 : vector<2x8x128xf32>
    %c4_i32 = arith.constant 4 : i32
    %c0_31 = arith.constant 0 : index
    %c0_32 = arith.constant 0 : index
    %c0_33 = arith.constant 0 : index
    %129 = vector.load %arg6[%c0_31, %c0_32, %c0_33] : memref<2x8x128xf32, #tpu.memory_space<vmem>>, vector<2x8x128xf32>
    tpu.vector_store %arg6[%c0_31, %c0_32, %c0_33], %120 {strides = array<i32>} : memref<2x8x128xf32, #tpu.memory_space<vmem>>, vector<2x8x128xf32>,
    %c0_34 = arith.constant 0 : index
    %c0_35 = arith.constant 0 : index
    %c0_36 = arith.constant 0 : index
    %130 = vector.load %arg7[%c0_34, %c0_35, %c0_36] : memref<2x8x128xf32, #tpu.memory_space<vmem>>, vector<2x8x128xf32>
    tpu.vector_store %arg7[%c0_34, %c0_35, %c0_36], %128 {strides = array<i32>} : memref<2x8x128xf32, #tpu.memory_space<vmem>>, vector<2x8x128xf32>,
    return
  }
  func.func @transform_0(%arg0: i32, %arg1: i32) -> (i32, i32, i32) {
    %c0_i32 = arith.constant 0 : i32
    %c0_i32_0 = arith.constant 0 : i32
    %c0_i32_1 = arith.constant 0 : i32
    return %c0_i32, %c0_i32_0, %arg0 : i32, i32, i32
  }
  func.func @transform_1(%arg0: i32, %arg1: i32) -> (i32, i32, i32) {
    %c0_i32 = arith.constant 0 : i32
    %c0_i32_0 = arith.constant 0 : i32
    %c0_i32_1 = arith.constant 0 : i32
    return %c0_i32, %c0_i32_0, %arg0 : i32, i32, i32
  }
  func.func @transform_2(%arg0: i32, %arg1: i32) -> (i32, i32, i32) {
    %c0_i32 = arith.constant 0 : i32
    %c0_i32_0 = arith.constant 0 : i32
    return %c0_i32, %arg1, %arg0 : i32, i32, i32
  }
  func.func @transform_3(%arg0: i32, %arg1: i32) -> (i32, i32, i32) {
    %c0_i32 = arith.constant 0 : i32
    %c0_i32_0 = arith.constant 0 : i32
    return %c0_i32, %arg1, %arg0 : i32, i32, i32
  }
  func.func @transform_4(%arg0: i32, %arg1: i32) -> (i32, i32, i32) {
    %c0_i32 = arith.constant 0 : i32
    %c0_i32_0 = arith.constant 0 : i32
    return %c0_i32, %arg1, %arg0 : i32, i32, i32
  }
  func.func @transform_5(%arg0: i32, %arg1: i32) -> (i32, i32, i32) {
    %c0_i32 = arith.constant 0 : i32
    %c0_i32_0 = arith.constant 0 : i32
    return %c0_i32, %arg1, %arg0 : i32, i32, i32
  }
}

</mosaic_0001>

<llo_original>
// kernel: _forward_impl.1
$region0: #{_forward_impl.1}
  #allocation0 [shape = 'u32[]', space=smem, size = 0x4, offset = 0x4, fixed_abs, tag = 'smem constant byte address 0x4 - core index']
  #allocation1 [shape = 'u32[144,128]{1,0:T(1,128)}', space=vmem, size = 0x12000, scoped, tag = 'internal scratch']
  %s0 = inlined_call_operand.vmem [shape: f32[4,2,256], index: 0, kind: input, shape index: {}]
  %s1 = inlined_call_operand.vmem [shape: f32[4,2,256], index: 1, kind: input, shape index: {}]
  %s2 = inlined_call_operand.vmem [shape: f32[4,8,256], index: 2, kind: input, shape index: {}]
  %s3 = inlined_call_operand.vmem [shape: f32[4,8,256], index: 3, kind: input, shape index: {}]
  %s4 = inlined_call_operand.vmem [shape: f32[2,8,256], index: 4, kind: output, shape index: {0}]
  %s5 = inlined_call_operand.vmem [shape: f32[2,8,256], index: 5, kind: output, shape index: {1}]
  %6 = xla_tuple %s4, %s5
  %s7 = sld [smem:[#allocation0]]
  $region283: #{_forward_impl.1} parent=0
    _
  %s9 = ssub.s32 1, %s7
  %s10 = scalar_select 0, %s9, %s7
  $region1: #{_forward_impl.1} parent=0
    #allocation2 [shape = 'u8[8192]{0}', space=vmem, size = 0x2000, scoped, tag = 'input window, operand 0']
    #allocation3 [shape = 'u8[8192]{0}', space=vmem, size = 0x2000, scoped, tag = 'input window, operand 1']
    #allocation4 [shape = 'u8[32768]{0}', space=vmem, size = 0x8000, scoped, tag = 'input window, operand 2']
    #allocation5 [shape = 'u8[32768]{0}', space=vmem, size = 0x8000, scoped, tag = 'input window, operand 3']
    #allocation6 [shape = 'u8[16384]{0}', space=vmem, size = 0x4000, scoped, tag = 'output window, operand 0']
    #allocation7 [shape = 'u8[16384]{0}', space=vmem, size = 0x4000, scoped, tag = 'output window, operand 1']
    loop: start=0, step=1, limit=4
    $region2: #{_forward_impl.1} parent=1 // loop_pre_header
      _
    $region3: #{_forward_impl.1} parent=1 // loop_header
      %s12 = sphi 0, %s16
      %p13 = scmp.ge.s32.totalorder %s12, 4
      %s19 = sphi 0, %s31
      %s20 = sphi 0, %s27
      %s21 = sphi 0, %s19
      %s22 = sphi 0, %s20
      %s23 = sphi 0, %s21
      %s24 = sphi 0, %s22
      %s34 = sphi 0, %s36
      %s37 = sphi 0, %s34
      %s38 = sphi 0, %s37
      %s54 = sphi 0, %s38
      %s60 = sphi 0, %s62
      %s63 = sphi 0, %s60
      %s64 = sphi 0, %s63
      %s80 = sphi 0, %s64
      %s88 = sphi 0, %s90
      %s91 = sphi 0, %s88
      %s92 = sphi 0, %s91
      %s108 = sphi 0, %s92
      %s116 = sphi 0, %s118
      %s119 = sphi 0, %s116
      %s120 = sphi 0, %s119
      %s136 = sphi 0, %s120
      %s144 = sphi 0, %s146
      %s147 = sphi 0, %s144
      %s148 = sphi 0, %s147
      %s164 = sphi 0, %s148
      %s172 = sphi 0, %s174
      %s175 = sphi 0, %s172
      %s176 = sphi 0, %s175
      %s192 = sphi 0, %s176
    $region4: #{_forward_impl.1} parent=1 // loop_header_branch
      %15 = sbr.rel (%p13) target = $region8
    $region5: #{_forward_impl.1} parent=1 // loop_body
      %s17 = ssub.s32 %s12, 1
      %s18 = ssub.s32 %s12, 2
      %s25 = sadd.s32 1, %s20
      %p26 = scmp.ge.s32.totalorder %s25, 1
      %s27 = scalar_select %p26, 0, %s25
      %s28 = sadd.s32 1, %s19
      %s29 = scalar_select %p26, %s28, %s19
      %p30 = scmp.ge.s32.totalorder %s29, 2
      %s31 = scalar_select %p30, 0, %s29
      %s32 = ssub.s32 %s19, %s31
      %p33 = scmp.eq.s32.totalorder %s32, 0
      %s35 = sadd.s32 %s34, 1
      %s36 = scalar_select %p33, %s34, %s35
      %p39 = pneg %p33
      %p40 = scmp.eq.s32.totalorder %s12, 1
      %p41 = por %p39, %p40
      %p42 = scmp.ne.s32.totalorder %s34, %s37
      %p43 = scmp.eq.s32.totalorder %s12, 0
      %p44 = por %p42, %p43
      %p45 = scmp.ne.s32.totalorder %s34, %s37
      %p46 = scmp.eq.s32.totalorder %s17, 1
      %p47 = por %p45, %p46
      %p48 = scmp.ne.s32.totalorder %s37, %s38
      %p49 = scmp.eq.s32.totalorder %s17, 0
      %p50 = por %p48, %p49
      %p51 = scmp.ne.s32.totalorder %s37, %s38
      %p52 = scmp.eq.s32.totalorder %s18, 1
      %p53 = por %p51, %p52
      %p55 = scmp.ne.s32.totalorder %s38, %s54
      %p56 = scmp.eq.s32.totalorder %s18, 0
      %p57 = por %p55, %p56
      %s58 = ssub.s32 %s19, %s31
      %p59 = scmp.eq.s32.totalorder %s58, 0
      %s61 = sadd.s32 %s60, 1
      %s62 = scalar_select %p59, %s60, %s61
      %p65 = pneg %p59
      %p66 = scmp.eq.s32.totalorder %s12, 1
      %p67 = por %p65, %p66
      %p68 = scmp.ne.s32.totalorder %s60, %s63
      %p69 = scmp.eq.s32.totalorder %s12, 0
      %p70 = por %p68, %p69
      %p71 = scmp.ne.s32.totalorder %s60, %s63
      %p72 = scmp.eq.s32.totalorder %s17, 1
      %p73 = por %p71, %p72
      %p74 = scmp.ne.s32.totalorder %s63, %s64
      %p75 = scmp.eq.s32.totalorder %s17, 0
      %p76 = por %p74, %p75
      %p77 = scmp.ne.s32.totalorder %s63, %s64
      %p78 = scmp.eq.s32.totalorder %s18, 1
      %p79 = por %p77, %p78
      %p81 = scmp.ne.s32.totalorder %s64, %s80
      %p82 = scmp.eq.s32.totalorder %s18, 0
      %p83 = por %p81, %p82
      %s84 = ssub.s32 %s20, %s27
      %s85 = ssub.s32 %s19, %s31
      %s86 = sor.u32 %s84, %s85
      %p87 = scmp.eq.s32.totalorder %s86, 0
      %s89 = sadd.s32 %s88, 1
      %s90 = scalar_select %p87, %s88, %s89
      %p93 = pneg %p87
      %p94 = scmp.eq.s32.totalorder %s12, 1
      %p95 = por %p93, %p94
      %p96 = scmp.ne.s32.totalorder %s88, %s91
      %p97 = scmp.eq.s32.totalorder %s12, 0
      %p98 = por %p96, %p97
      %p99 = scmp.ne.s32.totalorder %s88, %s91
      %p100 = scmp.eq.s32.totalorder %s17, 1
      %p101 = por %p99, %p100
      %p102 = scmp.ne.s32.totalorder %s91, %s92
      %p103 = scmp.eq.s32.totalorder %s17, 0
      %p104 = por %p102, %p103
      %p105 = scmp.ne.s32.totalorder %s91, %s92
      %p106 = scmp.eq.s32.totalorder %s18, 1
      %p107 = por %p105, %p106
      %p109 = scmp.ne.s32.totalorder %s92, %s108
      %p110 = scmp.eq.s32.totalorder %s18, 0
      %p111 = por %p109, %p110
      %s112 = ssub.s32 %s20, %s27
      %s113 = ssub.s32 %s19, %s31
      %s114 = sor.u32 %s112, %s113
      %p115 = scmp.eq.s32.totalorder %s114, 0
      %s117 = sadd.s32 %s116, 1
      %s118 = scalar_select %p115, %s116, %s117
      %p121 = pneg %p115
      %p122 = scmp.eq.s32.totalorder %s12, 1
      %p123 = por %p121, %p122
      %p124 = scmp.ne.s32.totalorder %s116, %s119
      %p125 = scmp.eq.s32.totalorder %s12, 0
      %p126 = por %p124, %p125
      %p127 = scmp.ne.s32.totalorder %s116, %s119
      %p128 = scmp.eq.s32.totalorder %s17, 1
      %p129 = por %p127, %p128
      %p130 = scmp.ne.s32.totalorder %s119, %s120
      %p131 = scmp.eq.s32.totalorder %s17, 0
      %p132 = por %p130, %p131
      %p133 = scmp.ne.s32.totalorder %s119, %s120
      %p134 = scmp.eq.s32.totalorder %s18, 1
      %p135 = por %p133, %p134
      %p137 = scmp.ne.s32.totalorder %s120, %s136
      %p138 = scmp.eq.s32.totalorder %s18, 0
      %p139 = por %p137, %p138
      %s140 = ssub.s32 %s20, %s27
      %s141 = ssub.s32 %s19, %s31
      %s142 = sor.u32 %s140, %s141
      %p143 = scmp.eq.s32.totalorder %s142, 0
      %s145 = sadd.s32 %s144, 1
      %s146 = scalar_select %p143, %s144, %s145
      %p149 = pneg %p143
      %p150 = scmp.eq.s32.totalorder %s12, 1
      %p151 = por %p149, %p150
      %p152 = scmp.ne.s32.totalorder %s144, %s147
      %p153 = scmp.eq.s32.totalorder %s12, 0
      %p154 = por %p152, %p153
      %p155 = scmp.ne.s32.totalorder %s144, %s147
      %p156 = scmp.eq.s32.totalorder %s17, 1
      %p157 = por %p155, %p156
      %p158 = scmp.ne.s32.totalorder %s147, %s148
      %p159 = scmp.eq.s32.totalorder %s17, 0
      %p160 = por %p158, %p159
      %p161 = scmp.ne.s32.totalorder %s147, %s148
      %p162 = scmp.eq.s32.totalorder %s18, 1
      %p163 = por %p161, %p162
      %p165 = scmp.ne.s32.totalorder %s148, %s164
      %p166 = scmp.eq.s32.totalorder %s18, 0
      %p167 = por %p165, %p166
      %s168 = ssub.s32 %s20, %s27
      %s169 = ssub.s32 %s19, %s31
      %s170 = sor.u32 %s168, %s169
      %p171 = scmp.eq.s32.totalorder %s170, 0
      %s173 = sadd.s32 %s172, 1
      %s174 = scalar_select %p171, %s172, %s173
      %p177 = pneg %p171
      %p178 = scmp.eq.s32.totalorder %s12, 1
      %p179 = por %p177, %p178
      %p180 = scmp.ne.s32.totalorder %s172, %s175
      %p181 = scmp.eq.s32.totalorder %s12, 0
      %p182 = por %p180, %p181
      %p183 = scmp.ne.s32.totalorder %s172, %s175
      %p184 = scmp.eq.s32.totalorder %s17, 1
      %p185 = por %p183, %p184
      %p186 = scmp.ne.s32.totalorder %s175, %s176
      %p187 = scmp.eq.s32.totalorder %s17, 0
      %p188 = por %p186, %p187
      %p189 = scmp.ne.s32.totalorder %s175, %s176
      %p190 = scmp.eq.s32.totalorder %s18, 1
      %p191 = por %p189, %p190
      %p193 = scmp.ne.s32.totalorder %s176, %s192
      %p194 = scmp.eq.s32.totalorder %s18, 0
      %p195 = por %p193, %p194
      %p196 = scmp.le.s32.totalorder 1, %s12
      %p197 = scmp.lt.s32.totalorder %s12, 3
      %p198 = pnand %p196, %p197
      %p199 = pneg %p198
      // Predicated region
      $region9: #{_forward_impl.1} parent=5 // pred_check
        _
      $region10: #{_forward_impl.1} parent=5 // pred_check_branch
        %201 = sbr.rel (%p198) target = $region12
      $region11: #{_forward_impl.1} parent=5 // pred_region
        %s202 = ssub.s32 %s12, 1
      $region12: #{_forward_impl.1} parent=5 // pred_fallthru
        _
      %p203 = scmp.lt.s32.totalorder %s12, 2
      // Predicated region
      $region13: #{_forward_impl.1} parent=5 // pred_check
        %p204 = pneg %p203
      $region14: #{_forward_impl.1} parent=5 // pred_check_branch
        %206 = sbr.rel (%p204) target = $region16
      $region15: #{_forward_impl.1} parent=5 // pred_region
        // Predicated region
        $region17: #{_forward_impl.1} parent=15 // pred_check
          %p207 = pneg %p44
        $region18: #{_forward_impl.1} parent=15 // pred_check_branch
          %209 = sbr.rel (%p207) target = $region20
        $region19: #{_forward_impl.1} parent=15 // pred_region
          %s210 = sand.u32 %s34, 1
          %s211 = sand.u32 %s34, 1
          %s212 = smul.addr %s211, 8
          %s213 = scalar_lea.vmem [#allocation2], %s212
          %s214 = smul.addr %s19, 2
          %s215 = scalar_lea.vmem %s0, %s214
          // Predicated region
          $region21: #{_forward_impl.1} parent=19 // pred_check
            _
          $region22: #{_forward_impl.1} parent=19 // pred_check_branch
            %217 = sbr.rel (0) target = $region24
          $region23: #{_forward_impl.1} parent=19 // pred_region
            // Predicated region
            $region25: #{_forward_impl.1} parent=23 // pred_check
              _
            $region26: #{_forward_impl.1} parent=23 // pred_check_branch
              %219 = sbr.rel target = $region28
            $region27: #{_forward_impl.1} parent=23 // pred_region
              // Predicated region
              $region40: #{_forward_impl.1} parent=27 // pred_check
                _
              $region41: #{_forward_impl.1} parent=27 // pred_check_branch
                %241 = sbr.rel (0) target = $region43
              $region42: #{_forward_impl.1} parent=27 // pred_region
                loop: start=0, step=1, limit=1
                $region44: #{_forward_impl.1} parent=42 // loop_pre_header
                  _
                $region45: #{_forward_impl.1} parent=42 // loop_header
                  %s243 = sphi 0, %s247
                  %p244 = scmp.ge.s32.totalorder %s243, 1
                  %s248 = sphi %s215, %s215
                  %s249 = sphi %s213, %s213
                $region46: #{_forward_impl.1} parent=42 // loop_header_branch
                  %246 = sbr.rel (%p244) target = $region50
                $region47: #{_forward_impl.1} parent=42 // loop_body
                  _
                $region48: #{_forward_impl.1} parent=42 // loop_footer
                  %s247 = sadd.s32 1, %s243
                $region49: #{_forward_impl.1} parent=42 // loop_footer_branch
                  %242 = sbr.rel target = $region45
                $region50: #{_forward_impl.1} parent=42 // loop_exit
                  _
                %s251 = ssub.s32 4, 1
                loop: start=0, step=1, limit=1
                $region51: #{_forward_impl.1} parent=42 // loop_pre_header
                  _
                $region52: #{_forward_impl.1} parent=42 // loop_header
                  %s253 = sphi 0, %s257
                  %p254 = scmp.ge.s32.totalorder %s253, 1
                  %s258 = sphi %s215, %s215
                  %s259 = sphi %s213, %s213
                $region53: #{_forward_impl.1} parent=42 // loop_header_branch
                  %256 = sbr.rel (%p254) target = $region57
                $region54: #{_forward_impl.1} parent=42 // loop_body
                  %v260 = vld [vmem:[%s258] sm:%s251]
                  %261 = vst [vmem:[%s259] sm:%s251] %v260
                  %v262 = vld [vmem:[%s258 + $0x4] sm:%s251]
                  %263 = vst [vmem:[%s259 + $0x2] sm:%s251] %v262
                  %v264 = vld [vmem:[%s258 + $0x8] sm:%s251]
                  %265 = vst [vmem:[%s259 + $0x4] sm:%s251] %v264
                  %v266 = vld [vmem:[%s258 + $0xc] sm:%s251]
                  %267 = vst [vmem:[%s259 + $0x6] sm:%s251] %v266
                $region55: #{_forward_impl.1} parent=42 // loop_footer
                  %s257 = sadd.s32 1, %s253
                $region56: #{_forward_impl.1} parent=42 // loop_footer_branch
                  %252 = sbr.rel target = $region52
                $region57: #{_forward_impl.1} parent=42 // loop_exit
                  _
              $region43: #{_forward_impl.1} parent=27 // pred_fallthru
                _
            $region28: #{_forward_impl.1} parent=23 // pred_fallthru
              _
            // Predicated region
            $region29: #{_forward_impl.1} parent=23 // pred_check
              _
            $region30: #{_forward_impl.1} parent=23 // pred_check_branch
              %221 = sbr.rel (0) target = $region32
            $region31: #{_forward_impl.1} parent=23 // pred_region
              %s223 = ssub.s32 4, 1
              loop: start=0, step=1, limit=1
              $region33: #{_forward_impl.1} parent=31 // loop_pre_header
                _
              $region34: #{_forward_impl.1} parent=31 // loop_header
                %s225 = sphi 0, %s229
                %p226 = scmp.ge.s32.totalorder %s225, 1
                %s230 = sphi %s215, %s215
                %s231 = sphi %s213, %s213
              $region35: #{_forward_impl.1} parent=31 // loop_header_branch
                %228 = sbr.rel (%p226) target = $region39
              $region36: #{_forward_impl.1} parent=31 // loop_body
                %v232 = vld [vmem:[%s230] sm:%s223]
                %233 = vst [vmem:[%s231] sm:%s223] %v232
                %v234 = vld [vmem:[%s230 + $0x4] sm:%s223]
                %235 = vst [vmem:[%s231 + $0x2] sm:%s223] %v234
                %v236 = vld [vmem:[%s230 + $0x8] sm:%s223]
                %237 = vst [vmem:[%s231 + $0x4] sm:%s223] %v236
                %v238 = vld [vmem:[%s230 + $0xc] sm:%s223]
                %239 = vst [vmem:[%s231 + $0x6] sm:%s223] %v238
              $region37: #{_forward_impl.1} parent=31 // loop_footer
                %s229 = sadd.s32 1, %s225
              $region38: #{_forward_impl.1} parent=31 // loop_footer_branch
                %224 = sbr.rel target = $region34
              $region39: #{_forward_impl.1} parent=31 // loop_exit
                _
            $region32: #{_forward_impl.1} parent=23 // pred_fallthru
              _
          $region24: #{_forward_impl.1} parent=19 // pred_fallthru
            _
          %268 = vnop
        $region20: #{_forward_impl.1} parent=15 // pred_fallthru
          _
        // Predicated region
        $region58: #{_forward_impl.1} parent=15 // pred_check
          %p269 = pneg %p70
        $region59: #{_forward_impl.1} parent=15 // pred_check_branch
          %271 = sbr.rel (%p269) target = $region61
        $region60: #{_forward_impl.1} parent=15 // pred_region
          %s272 = sand.u32 %s60, 1
          %s273 = sand.u32 %s60, 1
          %s274 = smul.addr %s273, 8
          %s275 = scalar_lea.vmem [#allocation3], %s274
          %s276 = smul.addr %s19, 2
          %s277 = scalar_lea.vmem %s1, %s276
          // Predicated region
          $region62: #{_forward_impl.1} parent=60 // pred_check
            _
          $region63: #{_forward_impl.1} parent=60 // pred_check_branch
            %279 = sbr.rel (0) target = $region65
          $region64: #{_forward_impl.1} parent=60 // pred_region
            // Predicated region
            $region66: #{_forward_impl.1} parent=64 // pred_check
              _
            $region67: #{_forward_impl.1} parent=64 // pred_check_branch
              %281 = sbr.rel target = $region69
            $region68: #{_forward_impl.1} parent=64 // pred_region
              // Predicated region
              $region81: #{_forward_impl.1} parent=68 // pred_check
                _
              $region82: #{_forward_impl.1} parent=68 // pred_check_branch
                %303 = sbr.rel (0) target = $region84
              $region83: #{_forward_impl.1} parent=68 // pred_region
                loop: start=0, step=1, limit=1
                $region85: #{_forward_impl.1} parent=83 // loop_pre_header
                  _
                $region86: #{_forward_impl.1} parent=83 // loop_header
                  %s305 = sphi 0, %s309
                  %p306 = scmp.ge.s32.totalorder %s305, 1
                  %s310 = sphi %s277, %s277
                  %s311 = sphi %s275, %s275
                $region87: #{_forward_impl.1} parent=83 // loop_header_branch
                  %308 = sbr.rel (%p306) target = $region91
                $region88: #{_forward_impl.1} parent=83 // loop_body
                  _
                $region89: #{_forward_impl.1} parent=83 // loop_footer
                  %s309 = sadd.s32 1, %s305
                $region90: #{_forward_impl.1} parent=83 // loop_footer_branch
                  %304 = sbr.rel target = $region86
                $region91: #{_forward_impl.1} parent=83 // loop_exit
                  _
                %s313 = ssub.s32 4, 1
                loop: start=0, step=1, limit=1
                $region92: #{_forward_impl.1} parent=83 // loop_pre_header
                  _
                $region93: #{_forward_impl.1} parent=83 // loop_header
                  %s315 = sphi 0, %s319
                  %p316 = scmp.ge.s32.totalorder %s315, 1
                  %s320 = sphi %s277, %s277
                  %s321 = sphi %s275, %s275
                $region94: #{_forward_impl.1} parent=83 // loop_header_branch
                  %318 = sbr.rel (%p316) target = $region98
                $region95: #{_forward_impl.1} parent=83 // loop_body
                  %v322 = vld [vmem:[%s320] sm:%s313]
                  %323 = vst [vmem:[%s321] sm:%s313] %v322
                  %v324 = vld [vmem:[%s320 + $0x4] sm:%s313]
                  %325 = vst [vmem:[%s321 + $0x2] sm:%s313] %v324
                  %v326 = vld [vmem:[%s320 + $0x8] sm:%s313]
                  %327 = vst [vmem:[%s321 + $0x4] sm:%s313] %v326
                  %v328 = vld [vmem:[%s320 + $0xc] sm:%s313]
                  %329 = vst [vmem:[%s321 + $0x6] sm:%s313] %v328
                $region96: #{_forward_impl.1} parent=83 // loop_footer
                  %s319 = sadd.s32 1, %s315
                $region97: #{_forward_impl.1} parent=83 // loop_footer_branch
                  %314 = sbr.rel target = $region93
                $region98: #{_forward_impl.1} parent=83 // loop_exit
                  _
              $region84: #{_forward_impl.1} parent=68 // pred_fallthru
                _
            $region69: #{_forward_impl.1} parent=64 // pred_fallthru
              _
            // Predicated region
            $region70: #{_forward_impl.1} parent=64 // pred_check
              _
            $region71: #{_forward_impl.1} parent=64 // pred_check_branch
              %283 = sbr.rel (0) target = $region73
            $region72: #{_forward_impl.1} parent=64 // pred_region
              %s285 = ssub.s32 4, 1
              loop: start=0, step=1, limit=1
              $region74: #{_forward_impl.1} parent=72 // loop_pre_header
                _
              $region75: #{_forward_impl.1} parent=72 // loop_header
                %s287 = sphi 0, %s291
                %p288 = scmp.ge.s32.totalorder %s287, 1
                %s292 = sphi %s277, %s277
                %s293 = sphi %s275, %s275
              $region76: #{_forward_impl.1} parent=72 // loop_header_branch
                %290 = sbr.rel (%p288) target = $region80
              $region77: #{_forward_impl.1} parent=72 // loop_body
                %v294 = vld [vmem:[%s292] sm:%s285]
                %295 = vst [vmem:[%s293] sm:%s285] %v294
                %v296 = vld [vmem:[%s292 + $0x4] sm:%s285]
                %297 = vst [vmem:[%s293 + $0x2] sm:%s285] %v296
                %v298 = vld [vmem:[%s292 + $0x8] sm:%s285]
                %299 = vst [vmem:[%s293 + $0x4] sm:%s285] %v298
                %v300 = vld [vmem:[%s292 + $0xc] sm:%s285]
                %301 = vst [vmem:[%s293 + $0x6] sm:%s285] %v300
              $region78: #{_forward_impl.1} parent=72 // loop_footer
                %s291 = sadd.s32 1, %s287
              $region79: #{_forward_impl.1} parent=72 // loop_footer_branch
                %286 = sbr.rel target = $region75
              $region80: #{_forward_impl.1} parent=72 // loop_exit
                _
            $region73: #{_forward_impl.1} parent=64 // pred_fallthru
              _
          $region65: #{_forward_impl.1} parent=60 // pred_fallthru
            _
          %330 = vnop
        $region61: #{_forward_impl.1} parent=15 // pred_fallthru
          _
        // Predicated region
        $region99: #{_forward_impl.1} parent=15 // pred_check
          %p331 = pneg %p98
        $region100: #{_forward_impl.1} parent=15 // pred_check_branch
          %333 = sbr.rel (%p331) target = $region102
        $region101: #{_forward_impl.1} parent=15 // pred_region
          %s334 = sand.u32 %s88, 1
          %s335 = sand.u32 %s88, 1
          %s336 = smul.addr %s335, 32
          %s337 = scalar_lea.vmem [#allocation4], %s336
          %s338 = smul.addr %s20, 2
          %s339 = sadd.s32 %s19, %s338
          %s340 = smul.addr %s339, 8
          %s341 = scalar_lea.vmem %s2, %s340
          // Predicated region
          $region103: #{_forward_impl.1} parent=101 // pred_check
            _
          $region104: #{_forward_impl.1} parent=101 // pred_check_branch
            %343 = sbr.rel (0) target = $region106
          $region105: #{_forward_impl.1} parent=101 // pred_region
            // Predicated region
            $region107: #{_forward_impl.1} parent=105 // pred_check
              _
            $region108: #{_forward_impl.1} parent=105 // pred_check_branch
              %345 = sbr.rel (0) target = $region110
            $region109: #{_forward_impl.1} parent=105 // pred_region
              // Predicated region
              $region122: #{_forward_impl.1} parent=109 // pred_check
                _
              $region123: #{_forward_impl.1} parent=109 // pred_check_branch
                %367 = sbr.rel (0) target = $region125
              $region124: #{_forward_impl.1} parent=109 // pred_region
                loop: start=0, step=1, limit=1
                $region126: #{_forward_impl.1} parent=124 // loop_pre_header
                  _
                $region127: #{_forward_impl.1} parent=124 // loop_header
                  %s369 = sphi 0, %s373
                  %p370 = scmp.ge.s32.totalorder %s369, 1
                  %s374 = sphi %s341, %s341
                  %s375 = sphi %s337, %s337
                $region128: #{_forward_impl.1} parent=124 // loop_header_branch
                  %372 = sbr.rel (%p370) target = $region132
                $region129: #{_forward_impl.1} parent=124 // loop_body
                  %v376 = vld [vmem:[%s374] sm:$0xff]
                  %377 = vst [vmem:[%s375] sm:$0xff] %v376
                  %v378 = vld [vmem:[%s374 + $0x10] sm:$0xff]
                  %379 = vst [vmem:[%s375 + $0x8] sm:$0xff] %v378
                  %v380 = vld [vmem:[%s374 + $0x20] sm:$0xff]
                  %381 = vst [vmem:[%s375 + $0x10] sm:$0xff] %v380
                  %v382 = vld [vmem:[%s374 + $0x30] sm:$0xff]
                  %383 = vst [vmem:[%s375 + $0x18] sm:$0xff] %v382
                $region130: #{_forward_impl.1} parent=124 // loop_footer
                  %s373 = sadd.s32 1, %s369
                $region131: #{_forward_impl.1} parent=124 // loop_footer_branch
                  %368 = sbr.rel target = $region127
                $region132: #{_forward_impl.1} parent=124 // loop_exit
                  _
              $region125: #{_forward_impl.1} parent=109 // pred_fallthru
                _
              // Predicated region
              $region133: #{_forward_impl.1} parent=109 // pred_check
                _
              $region134: #{_forward_impl.1} parent=109 // pred_check_branch
                %385 = sbr.rel target = $region136
              $region135: #{_forward_impl.1} parent=109 // pred_region
                _
              $region136: #{_forward_impl.1} parent=109 // pred_fallthru
                _
            $region110: #{_forward_impl.1} parent=105 // pred_fallthru
              _
            // Predicated region
            $region111: #{_forward_impl.1} parent=105 // pred_check
              _
            $region112: #{_forward_impl.1} parent=105 // pred_check_branch
              %347 = sbr.rel target = $region114
            $region113: #{_forward_impl.1} parent=105 // pred_region
              %s349 = ssub.s32 256, 1
              loop: start=0, step=1, limit=1
              $region115: #{_forward_impl.1} parent=113 // loop_pre_header
                _
              $region116: #{_forward_impl.1} parent=113 // loop_header
                %s351 = sphi 0, %s355
                %p352 = scmp.ge.s32.totalorder %s351, 1
                %s356 = sphi %s341, %s341
                %s357 = sphi %s337, %s337
              $region117: #{_forward_impl.1} parent=113 // loop_header_branch
                %354 = sbr.rel (%p352) target = $region121
              $region118: #{_forward_impl.1} parent=113 // loop_body
                %v358 = vld [vmem:[%s356] sm:%s349]
                %359 = vst [vmem:[%s357] sm:%s349] %v358
                %v360 = vld [vmem:[%s356 + $0x10] sm:%s349]
                %361 = vst [vmem:[%s357 + $0x8] sm:%s349] %v360
                %v362 = vld [vmem:[%s356 + $0x20] sm:%s349]
                %363 = vst [vmem:[%s357 + $0x10] sm:%s349] %v362
                %v364 = vld [vmem:[%s356 + $0x30] sm:%s349]
                %365 = vst [vmem:[%s357 + $0x18] sm:%s349] %v364
              $region119: #{_forward_impl.1} parent=113 // loop_footer
                %s355 = sadd.s32 1, %s351
              $region120: #{_forward_impl.1} parent=113 // loop_footer_branch
                %350 = sbr.rel target = $region116
              $region121: #{_forward_impl.1} parent=113 // loop_exit
                _
            $region114: #{_forward_impl.1} parent=105 // pred_fallthru
              _
          $region106: #{_forward_impl.1} parent=101 // pred_fallthru
            _
          %386 = vnop
        $region102: #{_forward_impl.1} parent=15 // pred_fallthru
          _
        // Predicated region
        $region137: #{_forward_impl.1} parent=15 // pred_check
          %p387 = pneg %p126
        $region138: #{_forward_impl.1} parent=15 // pred_check_branch
          %389 = sbr.rel (%p387) target = $region140
        $region139: #{_forward_impl.1} parent=15 // pred_region
          %s390 = sand.u32 %s116, 1
          %s391 = sand.u32 %s116, 1
          %s392 = smul.addr %s391, 32
          %s393 = scalar_lea.vmem [#allocation5], %s392
          %s394 = smul.addr %s20, 2
          %s395 = sadd.s32 %s19, %s394
          %s396 = smul.addr %s395, 8
          %s397 = scalar_lea.vmem %s3, %s396
          // Predicated region
          $region141: #{_forward_impl.1} parent=139 // pred_check
            _
          $region142: #{_forward_impl.1} parent=139 // pred_check_branch
            %399 = sbr.rel (0) target = $region144
          $region143: #{_forward_impl.1} parent=139 // pred_region
            // Predicated region
            $region145: #{_forward_impl.1} parent=143 // pred_check
              _
            $region146: #{_forward_impl.1} parent=143 // pred_check_branch
              %401 = sbr.rel (0) target = $region148
            $region147: #{_forward_impl.1} parent=143 // pred_region
              // Predicated region
              $region160: #{_forward_impl.1} parent=147 // pred_check
                _
              $region161: #{_forward_impl.1} parent=147 // pred_check_branch
                %423 = sbr.rel (0) target = $region163
              $region162: #{_forward_impl.1} parent=147 // pred_region
                loop: start=0, step=1, limit=1
                $region164: #{_forward_impl.1} parent=162 // loop_pre_header
                  _
                $region165: #{_forward_impl.1} parent=162 // loop_header
                  %s425 = sphi 0, %s429
                  %p426 = scmp.ge.s32.totalorder %s425, 1
                  %s430 = sphi %s397, %s397
                  %s431 = sphi %s393, %s393
                $region166: #{_forward_impl.1} parent=162 // loop_header_branch
                  %428 = sbr.rel (%p426) target = $region170
                $region167: #{_forward_impl.1} parent=162 // loop_body
                  %v432 = vld [vmem:[%s430] sm:$0xff]
                  %433 = vst [vmem:[%s431] sm:$0xff] %v432
                  %v434 = vld [vmem:[%s430 + $0x10] sm:$0xff]
                  %435 = vst [vmem:[%s431 + $0x8] sm:$0xff] %v434
                  %v436 = vld [vmem:[%s430 + $0x20] sm:$0xff]
                  %437 = vst [vmem:[%s431 + $0x10] sm:$0xff] %v436
                  %v438 = vld [vmem:[%s430 + $0x30] sm:$0xff]
                  %439 = vst [vmem:[%s431 + $0x18] sm:$0xff] %v438
                $region168: #{_forward_impl.1} parent=162 // loop_footer
                  %s429 = sadd.s32 1, %s425
                $region169: #{_forward_impl.1} parent=162 // loop_footer_branch
                  %424 = sbr.rel target = $region165
                $region170: #{_forward_impl.1} parent=162 // loop_exit
                  _
              $region163: #{_forward_impl.1} parent=147 // pred_fallthru
                _
              // Predicated region
              $region171: #{_forward_impl.1} parent=147 // pred_check
                _
              $region172: #{_forward_impl.1} parent=147 // pred_check_branch
                %441 = sbr.rel target = $region174
              $region173: #{_forward_impl.1} parent=147 // pred_region
                _
              $region174: #{_forward_impl.1} parent=147 // pred_fallthru
                _
            $region148: #{_forward_impl.1} parent=143 // pred_fallthru
              _
            // Predicated region
            $region149: #{_forward_impl.1} parent=143 // pred_check
              _
            $region150: #{_forward_impl.1} parent=143 // pred_check_branch
              %403 = sbr.rel target = $region152
            $region151: #{_forward_impl.1} parent=143 // pred_region
              %s405 = ssub.s32 256, 1
              loop: start=0, step=1, limit=1
              $region153: #{_forward_impl.1} parent=151 // loop_pre_header
                _
              $region154: #{_forward_impl.1} parent=151 // loop_header
                %s407 = sphi 0, %s411
                %p408 = scmp.ge.s32.totalorder %s407, 1
                %s412 = sphi %s397, %s397
                %s413 = sphi %s393, %s393
              $region155: #{_forward_impl.1} parent=151 // loop_header_branch
                %410 = sbr.rel (%p408) target = $region159
              $region156: #{_forward_impl.1} parent=151 // loop_body
                %v414 = vld [vmem:[%s412] sm:%s405]
                %415 = vst [vmem:[%s413] sm:%s405] %v414
                %v416 = vld [vmem:[%s412 + $0x10] sm:%s405]
                %417 = vst [vmem:[%s413 + $0x8] sm:%s405] %v416
                %v418 = vld [vmem:[%s412 + $0x20] sm:%s405]
                %419 = vst [vmem:[%s413 + $0x10] sm:%s405] %v418
                %v420 = vld [vmem:[%s412 + $0x30] sm:%s405]
                %421 = vst [vmem:[%s413 + $0x18] sm:%s405] %v420
              $region157: #{_forward_impl.1} parent=151 // loop_footer
                %s411 = sadd.s32 1, %s407
              $region158: #{_forward_impl.1} parent=151 // loop_footer_branch
                %406 = sbr.rel target = $region154
              $region159: #{_forward_impl.1} parent=151 // loop_exit
                _
            $region152: #{_forward_impl.1} parent=143 // pred_fallthru
              _
          $region144: #{_forward_impl.1} parent=139 // pred_fallthru
            _
          %442 = vnop
        $region140: #{_forward_impl.1} parent=15 // pred_fallthru
          _
      $region16: #{_forward_impl.1} parent=5 // pred_fallthru
        _
      %p443 = scmp.le.s32.totalorder 1, %s12
      %p444 = scmp.lt.s32.totalorder %s12, 3
      %p445 = pnand %p443, %p444
      %p446 = pneg %p445
      // Predicated region
      $region175: #{_forward_impl.1} parent=5 // pred_check
        _
      $region176: #{_forward_impl.1} parent=5 // pred_check_branch
        %448 = sbr.rel (%p445) target = $region178
      $region177: #{_forward_impl.1} parent=5 // pred_region
        %s449 = ssub.s32 %s12, 1
        %s450 = sand.u32 %s37, 1
        %s451 = sand.u32 %s37, 1
        %s452 = smul.addr %s451, 8
        %s453 = scalar_lea.vmem [#allocation2], %s452
        // Predicated region
        $region179: #{_forward_impl.1} parent=177 // pred_check
          %p454 = pneg %p50
        $region180: #{_forward_impl.1} parent=177 // pred_check_branch
          %456 = sbr.rel (%p454) target = $region182
        $region181: #{_forward_impl.1} parent=177 // pred_region
          _
        $region182: #{_forward_impl.1} parent=177 // pred_fallthru
          _
        %s457 = sand.u32 %s63, 1
        %s458 = sand.u32 %s63, 1
        %s459 = smul.addr %s458, 8
        %s460 = scalar_lea.vmem [#allocation3], %s459
        // Predicated region
        $region183: #{_forward_impl.1} parent=177 // pred_check
          %p461 = pneg %p76
        $region184: #{_forward_impl.1} parent=177 // pred_check_branch
          %463 = sbr.rel (%p461) target = $region186
        $region185: #{_forward_impl.1} parent=177 // pred_region
          _
        $region186: #{_forward_impl.1} parent=177 // pred_fallthru
          _
        %s464 = sand.u32 %s91, 1
        %s465 = sand.u32 %s91, 1
        %s466 = smul.addr %s465, 32
        %s467 = scalar_lea.vmem [#allocation4], %s466
        // Predicated region
        $region187: #{_forward_impl.1} parent=177 // pred_check
          %p468 = pneg %p104
        $region188: #{_forward_impl.1} parent=177 // pred_check_branch
          %470 = sbr.rel (%p468) target = $region190
        $region189: #{_forward_impl.1} parent=177 // pred_region
          _
        $region190: #{_forward_impl.1} parent=177 // pred_fallthru
          _
        %s471 = sand.u32 %s119, 1
        %s472 = sand.u32 %s119, 1
        %s473 = smul.addr %s472, 32
        %s474 = scalar_lea.vmem [#allocation5], %s473
        // Predicated region
        $region191: #{_forward_impl.1} parent=177 // pred_check
          %p475 = pneg %p132
        $region192: #{_forward_impl.1} parent=177 // pred_check_branch
          %477 = sbr.rel (%p475) target = $region194
        $region193: #{_forward_impl.1} parent=177 // pred_region
          _
        $region194: #{_forward_impl.1} parent=177 // pred_fallthru
          _
        %s478 = sand.u32 %s37, 1
        %s479 = sand.u32 %s37, 1
        %s480 = smul.addr %s479, 8
        %s481 = scalar_lea.vmem [#allocation2], %s480
        %p482 = pneg %p50
        %p483 = pneg %p47
        %s484 = sand.u32 %s63, 1
        %s485 = sand.u32 %s63, 1
        %s486 = smul.addr %s485, 8
        %s487 = scalar_lea.vmem [#allocation3], %s486
        %p488 = pneg %p76
        %p489 = pneg %p73
        %s490 = sand.u32 %s91, 1
        %s491 = sand.u32 %s91, 1
        %s492 = smul.addr %s491, 32
        %s493 = scalar_lea.vmem [#allocation4], %s492
        %p494 = pneg %p104
        %p495 = pneg %p101
        %s496 = sand.u32 %s119, 1
        %s497 = sand.u32 %s119, 1
        %s498 = smul.addr %s497, 32
        %s499 = scalar_lea.vmem [#allocation5], %s498
        %p500 = pneg %p132
        %p501 = pneg %p129
        %p502 = pneg %p160
        %p503 = pneg %p157
        %s504 = sand.u32 %s147, 1
        %s505 = sand.u32 %s147, 1
        %s506 = smul.addr %s505, 16
        %s507 = scalar_lea.vmem [#allocation6], %s506
        %p508 = pneg %p188
        %p509 = pneg %p185
        %s510 = sand.u32 %s175, 1
        %s511 = sand.u32 %s175, 1
        %s512 = smul.addr %s511, 16
        %s513 = scalar_lea.vmem [#allocation7], %s512
        %v514 = vld [vmem:[%s453] sm:$0x3]
        %v517 = vunpack.c.l.s4 1966171168
        %v518 = vunpack.c.0.s8 %v517
        %v519 = vlaneseq
        %v520 = vshrl.u32 %v519, 7
        %v521 = vsub.s32 %v518, %v520
        %v522 = vrot.slane %v514, %v521
        %v523 = vcombine.high %v522, %v522
        %v525 = vunpack.c.l.s4 1966171168
        %v526 = vunpack.c.0.s8 %v525
        %v527 = vlaneseq
        %v528 = vshrl.u32 %v527, 7
        %v529 = vsub.s32 %v526, %v528
        %v530 = vrot.slane %v522, %v529
        %v532 = vunpack.c.l.s4 1966171168
        %v533 = vunpack.c.0.s8 %v532
        %v534 = vlaneseq
        %v535 = vshrl.u32 %v534, 7
        %v536 = vsub.s32 %v533, %v535
        %v537 = vrot.slane %v523, %v536
        %v538 = vld [vmem:[%s460] sm:$0x3]
        %v541 = vunpack.c.l.s4 1966171168
        %v542 = vunpack.c.0.s8 %v541
        %v543 = vlaneseq
        %v544 = vshrl.u32 %v543, 7
        %v545 = vsub.s32 %v542, %v544
        %v546 = vrot.slane %v538, %v545
        %v547 = vcombine.high %v546, %v546
        %v549 = vunpack.c.l.s4 1966171168
        %v550 = vunpack.c.0.s8 %v549
        %v551 = vlaneseq
        %v552 = vshrl.u32 %v551, 7
        %v553 = vsub.s32 %v550, %v552
        %v554 = vrot.slane %v546, %v553
        %v556 = vunpack.c.l.s4 1966171168
        %v557 = vunpack.c.0.s8 %v556
        %v558 = vlaneseq
        %v559 = vshrl.u32 %v558, 7
        %v560 = vsub.s32 %v557, %v559
        %v561 = vrot.slane %v547, %v560
        %v562 = vld [vmem:[%s467] sm:$0xff]
        %v563 = vld [vmem:[%s474] sm:$0xff]
        %v564 = vlaneseq
        %v565 = vshrl.u32 %v564, 7
        %v566 = vsub.s32 0, %v565
        %v567 = vrot.slane %v530, %v566
        %v568 = vlaneseq
        %v569 = vshrl.u32 %v568, 7
        %v570 = vsub.s32 0, %v569
        %v571 = vrot.slane %v537, %v570
        %v574 = vmul.f32 %v567, %v562
        %v575 = vmul.f32 %v571, %v562
        %v576 = vlaneseq
        %v577 = vshrl.u32 %v576, 7
        %v578 = vsub.s32 0, %v577
        %v579 = vrot.slane %v554, %v578
        %v580 = vlaneseq
        %v581 = vshrl.u32 %v580, 7
        %v582 = vsub.s32 0, %v581
        %v583 = vrot.slane %v561, %v582
        %v586 = vmul.f32 %v579, %v563
        %v587 = vmul.f32 %v583, %v563
        %v588 = vsub.f32 %v574, %v586
        %v589 = vsub.f32 %v575, %v587
        %v590 = vadd.f32 %v588, 0.0
        %v591 = vadd.f32 %v589, 0.0
        %v592 = vmul.f32 %v567, %v563
        %v593 = vmul.f32 %v571, %v563
        %v594 = vmul.f32 %v579, %v562
        %v595 = vmul.f32 %v583, %v562
        %v596 = vadd.f32 %v592, %v594
        %v597 = vadd.f32 %v593, %v595
        %v598 = vadd.f32 %v596, 0.0
        %v599 = vadd.f32 %v597, 0.0
        %s600 = scalar_lea.vmem %s453, 2 [#allocation2]
        %v601 = vld [vmem:[%s600] sm:$0x3]
        %v604 = vunpack.c.l.s4 1966171168
        %v605 = vunpack.c.0.s8 %v604
        %v606 = vlaneseq
        %v607 = vshrl.u32 %v606, 7
        %v608 = vsub.s32 %v605, %v607
        %v609 = vrot.slane %v601, %v608
        %v610 = vcombine.high %v609, %v609
        %v612 = vunpack.c.l.s4 1966171168
        %v613 = vunpack.c.0.s8 %v612
        %v614 = vlaneseq
        %v615 = vshrl.u32 %v614, 7
        %v616 = vsub.s32 %v613, %v615
        %v617 = vrot.slane %v609, %v616
        %v619 = vunpack.c.l.s4 1966171168
        %v620 = vunpack.c.0.s8 %v619
        %v621 = vlaneseq
        %v622 = vshrl.u32 %v621, 7
        %v623 = vsub.s32 %v620, %v622
        %v624 = vrot.slane %v610, %v623
        %s625 = scalar_lea.vmem %s460, 2 [#allocation3]
        %v626 = vld [vmem:[%s625] sm:$0x3]
        %v629 = vunpack.c.l.s4 1966171168
        %v630 = vunpack.c.0.s8 %v629
        %v631 = vlaneseq
        %v632 = vshrl.u32 %v631, 7
        %v633 = vsub.s32 %v630, %v632
        %v634 = vrot.slane %v626, %v633
        %v635 = vcombine.high %v634, %v634
        %v637 = vunpack.c.l.s4 1966171168
        %v638 = vunpack.c.0.s8 %v637
        %v639 = vlaneseq
        %v640 = vshrl.u32 %v639, 7
        %v641 = vsub.s32 %v638, %v640
        %v642 = vrot.slane %v634, %v641
        %v644 = vunpack.c.l.s4 1966171168
        %v645 = vunpack.c.0.s8 %v644
        %v646 = vlaneseq
        %v647 = vshrl.u32 %v646, 7
        %v648 = vsub.s32 %v645, %v647
        %v649 = vrot.slane %v635, %v648
        %s650 = scalar_lea.vmem %s467, 8 [#allocation4]
        %v651 = vld [vmem:[%s650] sm:$0xff]
        %s652 = scalar_lea.vmem %s474, 8 [#allocation5]
        %v653 = vld [vmem:[%s652] sm:$0xff]
        %v654 = vlaneseq
        %v655 = vshrl.u32 %v654, 7
        %v656 = vsub.s32 0, %v655
        %v657 = vrot.slane %v617, %v656
        %v658 = vlaneseq
        %v659 = vshrl.u32 %v658, 7
        %v660 = vsub.s32 0, %v659
        %v661 = vrot.slane %v624, %v660
        %v664 = vmul.f32 %v657, %v651
        %v665 = vmul.f32 %v661, %v651
        %v666 = vlaneseq
        %v667 = vshrl.u32 %v666, 7
        %v668 = vsub.s32 0, %v667
        %v669 = vrot.slane %v642, %v668
        %v670 = vlaneseq
        %v671 = vshrl.u32 %v670, 7
        %v672 = vsub.s32 0, %v671
        %v673 = vrot.slane %v649, %v672
        %v676 = vmul.f32 %v669, %v653
        %v677 = vmul.f32 %v673, %v653
        %v678 = vsub.f32 %v664, %v676
        %v679 = vsub.f32 %v665, %v677
        %v680 = vadd.f32 %v590, %v678
        %v681 = vadd.f32 %v591, %v679
        %v682 = vmul.f32 %v657, %v653
        %v683 = vmul.f32 %v661, %v653
        %v684 = vmul.f32 %v669, %v651
        %v685 = vmul.f32 %v673, %v651
        %v686 = vadd.f32 %v682, %v684
        %v687 = vadd.f32 %v683, %v685
        %v688 = vadd.f32 %v598, %v686
        %v689 = vadd.f32 %v599, %v687
        %s690 = scalar_lea.vmem %s453, 4 [#allocation2]
        %v691 = vld [vmem:[%s690] sm:$0x3]
        %v694 = vunpack.c.l.s4 1966171168
        %v695 = vunpack.c.0.s8 %v694
        %v696 = vlaneseq
        %v697 = vshrl.u32 %v696, 7
        %v698 = vsub.s32 %v695, %v697
        %v699 = vrot.slane %v691, %v698
        %v700 = vcombine.high %v699, %v699
        %v702 = vunpack.c.l.s4 1966171168
        %v703 = vunpack.c.0.s8 %v702
        %v704 = vlaneseq
        %v705 = vshrl.u32 %v704, 7
        %v706 = vsub.s32 %v703, %v705
        %v707 = vrot.slane %v699, %v706
        %v709 = vunpack.c.l.s4 1966171168
        %v710 = vunpack.c.0.s8 %v709
        %v711 = vlaneseq
        %v712 = vshrl.u32 %v711, 7
        %v713 = vsub.s32 %v710, %v712
        %v714 = vrot.slane %v700, %v713
        %s715 = scalar_lea.vmem %s460, 4 [#allocation3]
        %v716 = vld [vmem:[%s715] sm:$0x3]
        %v719 = vunpack.c.l.s4 1966171168
        %v720 = vunpack.c.0.s8 %v719
        %v721 = vlaneseq
        %v722 = vshrl.u32 %v721, 7
        %v723 = vsub.s32 %v720, %v722
        %v724 = vrot.slane %v716, %v723
        %v725 = vcombine.high %v724, %v724
        %v727 = vunpack.c.l.s4 1966171168
        %v728 = vunpack.c.0.s8 %v727
        %v729 = vlaneseq
        %v730 = vshrl.u32 %v729, 7
        %v731 = vsub.s32 %v728, %v730
        %v732 = vrot.slane %v724, %v731
        %v734 = vunpack.c.l.s4 1966171168
        %v735 = vunpack.c.0.s8 %v734
        %v736 = vlaneseq
        %v737 = vshrl.u32 %v736, 7
        %v738 = vsub.s32 %v735, %v737
        %v739 = vrot.slane %v725, %v738
        %s740 = scalar_lea.vmem %s467, 16 [#allocation4]
        %v741 = vld [vmem:[%s740] sm:$0xff]
        %s742 = scalar_lea.vmem %s474, 16 [#allocation5]
        %v743 = vld [vmem:[%s742] sm:$0xff]
        %v744 = vlaneseq
        %v745 = vshrl.u32 %v744, 7
        %v746 = vsub.s32 0, %v745
        %v747 = vrot.slane %v707, %v746
        %v748 = vlaneseq
        %v749 = vshrl.u32 %v748, 7
        %v750 = vsub.s32 0, %v749
        %v751 = vrot.slane %v714, %v750
        %v754 = vmul.f32 %v747, %v741
        %v755 = vmul.f32 %v751, %v741
        %v756 = vlaneseq
        %v757 = vshrl.u32 %v756, 7
        %v758 = vsub.s32 0, %v757
        %v759 = vrot.slane %v732, %v758
        %v760 = vlaneseq
        %v761 = vshrl.u32 %v760, 7
        %v762 = vsub.s32 0, %v761
        %v763 = vrot.slane %v739, %v762
        %v766 = vmul.f32 %v759, %v743
        %v767 = vmul.f32 %v763, %v743
        %v768 = vsub.f32 %v754, %v766
        %v769 = vsub.f32 %v755, %v767
        %v770 = vadd.f32 %v680, %v768
        %v771 = vadd.f32 %v681, %v769
        %v772 = vmul.f32 %v747, %v743
        %v773 = vmul.f32 %v751, %v743
        %v774 = vmul.f32 %v759, %v741
        %v775 = vmul.f32 %v763, %v741
        %v776 = vadd.f32 %v772, %v774
        %v777 = vadd.f32 %v773, %v775
        %v778 = vadd.f32 %v688, %v776
        %v779 = vadd.f32 %v689, %v777
        %s780 = scalar_lea.vmem %s453, 6 [#allocation2]
        %v781 = vld [vmem:[%s780] sm:$0x3]
        %v784 = vunpack.c.l.s4 1966171168
        %v785 = vunpack.c.0.s8 %v784
        %v786 = vlaneseq
        %v787 = vshrl.u32 %v786, 7
        %v788 = vsub.s32 %v785, %v787
        %v789 = vrot.slane %v781, %v788
        %v790 = vcombine.high %v789, %v789
        %v792 = vunpack.c.l.s4 1966171168
        %v793 = vunpack.c.0.s8 %v792
        %v794 = vlaneseq
        %v795 = vshrl.u32 %v794, 7
        %v796 = vsub.s32 %v793, %v795
        %v797 = vrot.slane %v789, %v796
        %v799 = vunpack.c.l.s4 1966171168
        %v800 = vunpack.c.0.s8 %v799
        %v801 = vlaneseq
        %v802 = vshrl.u32 %v801, 7
        %v803 = vsub.s32 %v800, %v802
        %v804 = vrot.slane %v790, %v803
        %s805 = scalar_lea.vmem %s460, 6 [#allocation3]
        %v806 = vld [vmem:[%s805] sm:$0x3]
        %v809 = vunpack.c.l.s4 1966171168
        %v810 = vunpack.c.0.s8 %v809
        %v811 = vlaneseq
        %v812 = vshrl.u32 %v811, 7
        %v813 = vsub.s32 %v810, %v812
        %v814 = vrot.slane %v806, %v813
        %v815 = vcombine.high %v814, %v814
        %v817 = vunpack.c.l.s4 1966171168
        %v818 = vunpack.c.0.s8 %v817
        %v819 = vlaneseq
        %v820 = vshrl.u32 %v819, 7
        %v821 = vsub.s32 %v818, %v820
        %v822 = vrot.slane %v814, %v821
        %v824 = vunpack.c.l.s4 1966171168
        %v825 = vunpack.c.0.s8 %v824
        %v826 = vlaneseq
        %v827 = vshrl.u32 %v826, 7
        %v828 = vsub.s32 %v825, %v827
        %v829 = vrot.slane %v815, %v828
        %s830 = scalar_lea.vmem %s467, 24 [#allocation4]
        %v831 = vld [vmem:[%s830] sm:$0xff]
        %s832 = scalar_lea.vmem %s474, 24 [#allocation5]
        %v833 = vld [vmem:[%s832] sm:$0xff]
        %v834 = vlaneseq
        %v835 = vshrl.u32 %v834, 7
        %v836 = vsub.s32 0, %v835
        %v837 = vrot.slane %v797, %v836
        %v838 = vlaneseq
        %v839 = vshrl.u32 %v838, 7
        %v840 = vsub.s32 0, %v839
        %v841 = vrot.slane %v804, %v840
        %v844 = vmul.f32 %v837, %v831
        %v845 = vmul.f32 %v841, %v831
        %v846 = vlaneseq
        %v847 = vshrl.u32 %v846, 7
        %v848 = vsub.s32 0, %v847
        %v849 = vrot.slane %v822, %v848
        %v850 = vlaneseq
        %v851 = vshrl.u32 %v850, 7
        %v852 = vsub.s32 0, %v851
        %v853 = vrot.slane %v829, %v852
        %v856 = vmul.f32 %v849, %v833
        %v857 = vmul.f32 %v853, %v833
        %v858 = vsub.f32 %v844, %v856
        %v859 = vsub.f32 %v845, %v857
        %v860 = vadd.f32 %v770, %v858
        %v861 = vadd.f32 %v771, %v859
        %v862 = vmul.f32 %v837, %v833
        %v863 = vmul.f32 %v841, %v833
        %v864 = vmul.f32 %v849, %v831
        %v865 = vmul.f32 %v853, %v831
        %v866 = vadd.f32 %v862, %v864
        %v867 = vadd.f32 %v863, %v865
        %v868 = vadd.f32 %v778, %v866
        %v869 = vadd.f32 %v779, %v867
        %870 = vst [vmem:[%s507] sm:$0xff] %v860
        %871 = vst [vmem:[%s507 + $0x8] sm:$0xff] %v861
        %872 = vst [vmem:[%s513] sm:$0xff] %v868
        %873 = vst [vmem:[%s513 + $0x8] sm:$0xff] %v869
        %s874 = sand.u32 %s147, 1
        %s875 = sand.u32 %s147, 1
        %s876 = smul.addr %s875, 16
        %s877 = scalar_lea.vmem [#allocation6], %s876
        %s878 = sand.u32 %s175, 1
        %s879 = sand.u32 %s175, 1
        %s880 = smul.addr %s879, 16
        %s881 = scalar_lea.vmem [#allocation7], %s880
        // Predicated region
        $region195: #{_forward_impl.1} parent=177 // pred_check
          %p882 = pneg %p157
        $region196: #{_forward_impl.1} parent=177 // pred_check_branch
          %884 = sbr.rel (%p882) target = $region198
        $region197: #{_forward_impl.1} parent=177 // pred_region
          %s885 = smul.addr %s22, 2
          %s886 = sadd.s32 %s21, %s885
          %s887 = smul.addr %s886, 8
          %s888 = scalar_lea.vmem %s4, %s887
          // Predicated region
          $region199: #{_forward_impl.1} parent=197 // pred_check
            _
          $region200: #{_forward_impl.1} parent=197 // pred_check_branch
            %890 = sbr.rel (0) target = $region202
          $region201: #{_forward_impl.1} parent=197 // pred_region
            // Predicated region
            $region203: #{_forward_impl.1} parent=201 // pred_check
              _
            $region204: #{_forward_impl.1} parent=201 // pred_check_branch
              %892 = sbr.rel (0) target = $region206
            $region205: #{_forward_impl.1} parent=201 // pred_region
              // Predicated region
              $region218: #{_forward_impl.1} parent=205 // pred_check
                _
              $region219: #{_forward_impl.1} parent=205 // pred_check_branch
                %910 = sbr.rel (0) target = $region221
              $region220: #{_forward_impl.1} parent=205 // pred_region
                loop: start=0, step=1, limit=1
                $region222: #{_forward_impl.1} parent=220 // loop_pre_header
                  _
                $region223: #{_forward_impl.1} parent=220 // loop_header
                  %s912 = sphi 0, %s916
                  %p913 = scmp.ge.s32.totalorder %s912, 1
                  %s917 = sphi %s877, %s877
                  %s918 = sphi %s888, %s888
                $region224: #{_forward_impl.1} parent=220 // loop_header_branch
                  %915 = sbr.rel (%p913) target = $region228
                $region225: #{_forward_impl.1} parent=220 // loop_body
                  %v919 = vld [vmem:[%s917] sm:$0xff]
                  %920 = vst [vmem:[%s918] sm:$0xff] %v919
                  %v921 = vld [vmem:[%s917 + $0x8] sm:$0xff]
                  %922 = vst [vmem:[%s918 + $0x10] sm:$0xff] %v921
                $region226: #{_forward_impl.1} parent=220 // loop_footer
                  %s916 = sadd.s32 1, %s912
                $region227: #{_forward_impl.1} parent=220 // loop_footer_branch
                  %911 = sbr.rel target = $region223
                $region228: #{_forward_impl.1} parent=220 // loop_exit
                  _
              $region221: #{_forward_impl.1} parent=205 // pred_fallthru
                _
              // Predicated region
              $region229: #{_forward_impl.1} parent=205 // pred_check
                _
              $region230: #{_forward_impl.1} parent=205 // pred_check_branch
                %924 = sbr.rel target = $region232
              $region231: #{_forward_impl.1} parent=205 // pred_region
                _
              $region232: #{_forward_impl.1} parent=205 // pred_fallthru
                _
            $region206: #{_forward_impl.1} parent=201 // pred_fallthru
              _
            // Predicated region
            $region207: #{_forward_impl.1} parent=201 // pred_check
              _
            $region208: #{_forward_impl.1} parent=201 // pred_check_branch
              %894 = sbr.rel target = $region210
            $region209: #{_forward_impl.1} parent=201 // pred_region
              %s896 = ssub.s32 256, 1
              loop: start=0, step=1, limit=1
              $region211: #{_forward_impl.1} parent=209 // loop_pre_header
                _
              $region212: #{_forward_impl.1} parent=209 // loop_header
                %s898 = sphi 0, %s902
                %p899 = scmp.ge.s32.totalorder %s898, 1
                %s903 = sphi %s877, %s877
                %s904 = sphi %s888, %s888
              $region213: #{_forward_impl.1} parent=209 // loop_header_branch
                %901 = sbr.rel (%p899) target = $region217
              $region214: #{_forward_impl.1} parent=209 // loop_body
                %v905 = vld [vmem:[%s903] sm:%s896]
                %906 = vst [vmem:[%s904] sm:%s896] %v905
                %v907 = vld [vmem:[%s903 + $0x8] sm:%s896]
                %908 = vst [vmem:[%s904 + $0x10] sm:%s896] %v907
              $region215: #{_forward_impl.1} parent=209 // loop_footer
                %s902 = sadd.s32 1, %s898
              $region216: #{_forward_impl.1} parent=209 // loop_footer_branch
                %897 = sbr.rel target = $region212
              $region217: #{_forward_impl.1} parent=209 // loop_exit
                _
            $region210: #{_forward_impl.1} parent=201 // pred_fallthru
              _
          $region202: #{_forward_impl.1} parent=197 // pred_fallthru
            _
          %925 = vnop
        $region198: #{_forward_impl.1} parent=177 // pred_fallthru
          _
        // Predicated region
        $region233: #{_forward_impl.1} parent=177 // pred_check
          %p926 = pneg %p185
        $region234: #{_forward_impl.1} parent=177 // pred_check_branch
          %928 = sbr.rel (%p926) target = $region236
        $region235: #{_forward_impl.1} parent=177 // pred_region
          %s929 = smul.addr %s22, 2
          %s930 = sadd.s32 %s21, %s929
          %s931 = smul.addr %s930, 8
          %s932 = scalar_lea.vmem %s5, %s931
          // Predicated region
          $region237: #{_forward_impl.1} parent=235 // pred_check
            _
          $region238: #{_forward_impl.1} parent=235 // pred_check_branch
            %934 = sbr.rel (0) target = $region240
          $region239: #{_forward_impl.1} parent=235 // pred_region
            // Predicated region
            $region241: #{_forward_impl.1} parent=239 // pred_check
              _
            $region242: #{_forward_impl.1} parent=239 // pred_check_branch
              %936 = sbr.rel (0) target = $region244
            $region243: #{_forward_impl.1} parent=239 // pred_region
              // Predicated region
              $region256: #{_forward_impl.1} parent=243 // pred_check
                _
              $region257: #{_forward_impl.1} parent=243 // pred_check_branch
                %954 = sbr.rel (0) target = $region259
              $region258: #{_forward_impl.1} parent=243 // pred_region
                loop: start=0, step=1, limit=1
                $region260: #{_forward_impl.1} parent=258 // loop_pre_header
                  _
                $region261: #{_forward_impl.1} parent=258 // loop_header
                  %s956 = sphi 0, %s960
                  %p957 = scmp.ge.s32.totalorder %s956, 1
                  %s961 = sphi %s881, %s881
                  %s962 = sphi %s932, %s932
                $region262: #{_forward_impl.1} parent=258 // loop_header_branch
                  %959 = sbr.rel (%p957) target = $region266
                $region263: #{_forward_impl.1} parent=258 // loop_body
                  %v963 = vld [vmem:[%s961] sm:$0xff]
                  %964 = vst [vmem:[%s962] sm:$0xff] %v963
                  %v965 = vld [vmem:[%s961 + $0x8] sm:$0xff]
                  %966 = vst [vmem:[%s962 + $0x10] sm:$0xff] %v965
                $region264: #{_forward_impl.1} parent=258 // loop_footer
                  %s960 = sadd.s32 1, %s956
                $region265: #{_forward_impl.1} parent=258 // loop_footer_branch
                  %955 = sbr.rel target = $region261
                $region266: #{_forward_impl.1} parent=258 // loop_exit
                  _
              $region259: #{_forward_impl.1} parent=243 // pred_fallthru
                _
              // Predicated region
              $region267: #{_forward_impl.1} parent=243 // pred_check
                _
              $region268: #{_forward_impl.1} parent=243 // pred_check_branch
                %968 = sbr.rel target = $region270
              $region269: #{_forward_impl.1} parent=243 // pred_region
                _
              $region270: #{_forward_impl.1} parent=243 // pred_fallthru
                _
            $region244: #{_forward_impl.1} parent=239 // pred_fallthru
              _
            // Predicated region
            $region245: #{_forward_impl.1} parent=239 // pred_check
              _
            $region246: #{_forward_impl.1} parent=239 // pred_check_branch
              %938 = sbr.rel target = $region248
            $region247: #{_forward_impl.1} parent=239 // pred_region
              %s940 = ssub.s32 256, 1
              loop: start=0, step=1, limit=1
              $region249: #{_forward_impl.1} parent=247 // loop_pre_header
                _
              $region250: #{_forward_impl.1} parent=247 // loop_header
                %s942 = sphi 0, %s946
                %p943 = scmp.ge.s32.totalorder %s942, 1
                %s947 = sphi %s881, %s881
                %s948 = sphi %s932, %s932
              $region251: #{_forward_impl.1} parent=247 // loop_header_branch
                %945 = sbr.rel (%p943) target = $region255
              $region252: #{_forward_impl.1} parent=247 // loop_body
                %v949 = vld [vmem:[%s947] sm:%s940]
                %950 = vst [vmem:[%s948] sm:%s940] %v949
                %v951 = vld [vmem:[%s947 + $0x8] sm:%s940]
                %952 = vst [vmem:[%s948 + $0x10] sm:%s940] %v951
              $region253: #{_forward_impl.1} parent=247 // loop_footer
                %s946 = sadd.s32 1, %s942
              $region254: #{_forward_impl.1} parent=247 // loop_footer_branch
                %941 = sbr.rel target = $region250
              $region255: #{_forward_impl.1} parent=247 // loop_exit
                _
            $region248: #{_forward_impl.1} parent=239 // pred_fallthru
              _
          $region240: #{_forward_impl.1} parent=235 // pred_fallthru
            _
          %969 = vnop
        $region236: #{_forward_impl.1} parent=177 // pred_fallthru
          _
      $region178: #{_forward_impl.1} parent=5 // pred_fallthru
        _
      %p970 = scmp.le.s32.totalorder 2, %s12
      // Predicated region
      $region271: #{_forward_impl.1} parent=5 // pred_check
        %p971 = pneg %p970
      $region272: #{_forward_impl.1} parent=5 // pred_check_branch
        %973 = sbr.rel (%p971) target = $region274
      $region273: #{_forward_impl.1} parent=5 // pred_region
        %s974 = ssub.s32 %s12, 2
        // Predicated region
        $region275: #{_forward_impl.1} parent=273 // pred_check
          %p975 = pneg %p163
        $region276: #{_forward_impl.1} parent=273 // pred_check_branch
          %977 = sbr.rel (%p975) target = $region278
        $region277: #{_forward_impl.1} parent=273 // pred_region
          %s978 = sand.u32 %s148, 1
          %s979 = sand.u32 %s148, 1
          %s980 = smul.addr %s979, 16
          %s981 = scalar_lea.vmem [#allocation6], %s980
        $region278: #{_forward_impl.1} parent=273 // pred_fallthru
          _
        // Predicated region
        $region279: #{_forward_impl.1} parent=273 // pred_check
          %p982 = pneg %p191
        $region280: #{_forward_impl.1} parent=273 // pred_check_branch
          %984 = sbr.rel (%p982) target = $region282
        $region281: #{_forward_impl.1} parent=273 // pred_region
          %s985 = sand.u32 %s176, 1
          %s986 = sand.u32 %s176, 1
          %s987 = smul.addr %s986, 16
          %s988 = scalar_lea.vmem [#allocation7], %s987
        $region282: #{_forward_impl.1} parent=273 // pred_fallthru
          _
      $region274: #{_forward_impl.1} parent=5 // pred_fallthru
        _
    $region6: #{_forward_impl.1} parent=1 // loop_footer
      %s16 = sadd.s32 1, %s12
    $region7: #{_forward_impl.1} parent=1 // loop_footer_branch
      %11 = sbr.rel target = $region3
    $region8: #{_forward_impl.1} parent=1 // loop_exit
      _

// kernel: reverse.1
$region0: #{reverse.1}
  #allocation0 [shape = 's32[1]{0}', space=sflag, size = 0x4, scoped, tag = 'scoped memory for reverse.1']
  %s0 = inlined_call_operand.vmem [shape: f32[2,4,16,16,7], index: 0, kind: input, shape index: {}]
  %s1 = inlined_call_operand.vmem [shape: f32[2,4,16,16,7], index: 1, kind: output, shape index: {}]
  %s2 = scalar_lea.vmem %s0, 96
  %v3 = vld [vmem:[%s2] sm:$0xff]
  %4 = vst [vmem:[%s1] sm:$0xff] %v3
  %s5 = scalar_lea.vmem %s0, 544
  %v6 = vld [vmem:[%s5] sm:$0xff]
  %s7 = scalar_lea.vmem %s1, 448
  %8 = vst [vmem:[%s7] sm:$0xff] %v6
  %s9 = scalar_lea.vmem %s0, 208
  %v10 = vld [vmem:[%s9] sm:$0xff]
  %s11 = scalar_lea.vmem %s1, 112
  %12 = vst [vmem:[%s11] sm:$0xff] %v10
  %s13 = scalar_lea.vmem %s0, 656
  %v14 = vld [vmem:[%s13] sm:$0xff]
  %s15 = scalar_lea.vmem %s1, 560
  %16 = vst [vmem:[%s15] sm:$0xff] %v14
  %s17 = scalar_lea.vmem %s0, 320
  %v18 = vld [vmem:[%s17] sm:$0xff]
  %s19 = scalar_lea.vmem %s1, 224
  %20 = vst [vmem:[%s19] sm:$0xff] %v18
  %s21 = scalar_lea.vmem %s0, 768
  %v22 = vld [vmem:[%s21] sm:$0xff]
  %s23 = scalar_lea.vmem %s1, 672
  %24 = vst [vmem:[%s23] sm:$0xff] %v22
  %s25 = scalar_lea.vmem %s0, 432
  %v26 = vld [vmem:[%s25] sm:$0xff]
  %s27 = scalar_lea.vmem %s1, 336
  %28 = vst [vmem:[%s27] sm:$0xff] %v26
  %s29 = scalar_lea.vmem %s0, 880
  %v30 = vld [vmem:[%s29] sm:$0xff]
  %s31 = scalar_lea.vmem %s1, 784
  %32 = vst [vmem:[%s31] sm:$0xff] %v30
  %s33 = scalar_lea.vmem %s0, 80
  %v34 = vld [vmem:[%s33] sm:$0xff]
  %s35 = scalar_lea.vmem %s1, 16
  %36 = vst [vmem:[%s35] sm:$0xff] %v34
  %s37 = scalar_lea.vmem %s0, 528
  %v38 = vld [vmem:[%s37] sm:$0xff]
  %s39 = scalar_lea.vmem %s1, 464
  %40 = vst [vmem:[%s39] sm:$0xff] %v38
  %s41 = scalar_lea.vmem %s0, 192
  %v42 = vld [vmem:[%s41] sm:$0xff]
  %s43 = scalar_lea.vmem %s1, 128
  %44 = vst [vmem:[%s43] sm:$0xff] %v42
  %s45 = scalar_lea.vmem %s0, 640
  %v46 = vld [vmem:[%s45] sm:$0xff]
  %s47 = scalar_lea.vmem %s1, 576
  %48 = vst [vmem:[%s47] sm:$0xff] %v46
  %s49 = scalar_lea.vmem %s0, 304
  %v50 = vld [vmem:[%s49] sm:$0xff]
  %s51 = scalar_lea.vmem %s1, 240
  %52 = vst [vmem:[%s51] sm:$0xff] %v50
  %s53 = scalar_lea.vmem %s0, 752
  %v54 = vld [vmem:[%s53] sm:$0xff]
  %s55 = scalar_lea.vmem %s1, 688
  %56 = vst [vmem:[%s55] sm:$0xff] %v54
  %s57 = scalar_lea.vmem %s0, 416
  %v58 = vld [vmem:[%s57] sm:$0xff]
  %s59 = scalar_lea.vmem %s1, 352
  %60 = vst [vmem:[%s59] sm:$0xff] %v58
  %s61 = scalar_lea.vmem %s0, 864
  %v62 = vld [vmem:[%s61] sm:$0xff]
  %s63 = scalar_lea.vmem %s1, 800
  %64 = vst [vmem:[%s63] sm:$0xff] %v62
  %s65 = scalar_lea.vmem %s0, 64
  %v66 = vld [vmem:[%s65] sm:$0xff]
  %s67 = scalar_lea.vmem %s1, 32
  %68 = vst [vmem:[%s67] sm:$0xff] %v66
  %s69 = scalar_lea.vmem %s0, 512
  %v70 = vld [vmem:[%s69] sm:$0xff]
  %s71 = scalar_lea.vmem %s1, 480
  %72 = vst [vmem:[%s71] sm:$0xff] %v70
  %s73 = scalar_lea.vmem %s0, 176
  %v74 = vld [vmem:[%s73] sm:$0xff]
  %s75 = scalar_lea.vmem %s1, 144
  %76 = vst [vmem:[%s75] sm:$0xff] %v74
  %s77 = scalar_lea.vmem %s0, 624
  %v78 = vld [vmem:[%s77] sm:$0xff]
  %s79 = scalar_lea.vmem %s1, 592
  %80 = vst [vmem:[%s79] sm:$0xff] %v78
  %s81 = scalar_lea.vmem %s0, 288
  %v82 = vld [vmem:[%s81] sm:$0xff]
  %s83 = scalar_lea.vmem %s1, 256
  %84 = vst [vmem:[%s83] sm:$0xff] %v82
  %s85 = scalar_lea.vmem %s0, 736
  %v86 = vld [vmem:[%s85] sm:$0xff]
  %s87 = scalar_lea.vmem %s1, 704
  %88 = vst [vmem:[%s87] sm:$0xff] %v86
  %s89 = scalar_lea.vmem %s0, 400
  %v90 = vld [vmem:[%s89] sm:$0xff]
  %s91 = scalar_lea.vmem %s1, 368
  %92 = vst [vmem:[%s91] sm:$0xff] %v90
  %s93 = scalar_lea.vmem %s0, 848
  %v94 = vld [vmem:[%s93] sm:$0xff]
  %s95 = scalar_lea.vmem %s1, 816
  %96 = vst [vmem:[%s95] sm:$0xff] %v94
  %s97 = scalar_lea.vmem %s0, 48
  %v98 = vld [vmem:[%s97] sm:$0xff]
  %s99 = scalar_lea.vmem %s1, 48
  %100 = vst [vmem:[%s99] sm:$0xff] %v98
  %s101 = scalar_lea.vmem %s0, 496
  %v102 = vld [vmem:[%s101] sm:$0xff]
  %s103 = scalar_lea.vmem %s1, 496
  %104 = vst [vmem:[%s103] sm:$0xff] %v102
  %s105 = scalar_lea.vmem %s0, 160
  %v106 = vld [vmem:[%s105] sm:$0xff]
  %s107 = scalar_lea.vmem %s1, 160
  %108 = vst [vmem:[%s107] sm:$0xff] %v106
  %s109 = scalar_lea.vmem %s0, 608
  %v110 = vld [vmem:[%s109] sm:$0xff]
  %s111 = scalar_lea.vmem %s1, 608
  %112 = vst [vmem:[%s111] sm:$0xff] %v110
  %s113 = scalar_lea.vmem %s0, 272
  %v114 = vld [vmem:[%s113] sm:$0xff]
  %s115 = scalar_lea.vmem %s1, 272
  %116 = vst [vmem:[%s115] sm:$0xff] %v114
  %s117 = scalar_lea.vmem %s0, 720
  %v118 = vld [vmem:[%s117] sm:$0xff]
  %s119 = scalar_lea.vmem %s1, 720
  %120 = vst [vmem:[%s119] sm:$0xff] %v118
  %s121 = scalar_lea.vmem %s0, 384
  %v122 = vld [vmem:[%s121] sm:$0xff]
  %s123 = scalar_lea.vmem %s1, 384
  %124 = vst [vmem:[%s123] sm:$0xff] %v122
  %s125 = scalar_lea.vmem %s0, 832
  %v126 = vld [vmem:[%s125] sm:$0xff]
  %s127 = scalar_lea.vmem %s1, 832
  %128 = vst [vmem:[%s127] sm:$0xff] %v126
  %s129 = scalar_lea.vmem %s0, 32
  %v130 = vld [vmem:[%s129] sm:$0xff]
  %s131 = scalar_lea.vmem %s1, 64
  %132 = vst [vmem:[%s131] sm:$0xff] %v130
  %s133 = scalar_lea.vmem %s0, 480
  %v134 = vld [vmem:[%s133] sm:$0xff]
  %s135 = scalar_lea.vmem %s1, 512
  %136 = vst [vmem:[%s135] sm:$0xff] %v134
  %s137 = scalar_lea.vmem %s0, 144
  %v138 = vld [vmem:[%s137] sm:$0xff]
  %s139 = scalar_lea.vmem %s1, 176
  %140 = vst [vmem:[%s139] sm:$0xff] %v138
  %s141 = scalar_lea.vmem %s0, 592
  %v142 = vld [vmem:[%s141] sm:$0xff]
  %s143 = scalar_lea.vmem %s1, 624
  %144 = vst [vmem:[%s143] sm:$0xff] %v142
  %s145 = scalar_lea.vmem %s0, 256
  %v146 = vld [vmem:[%s145] sm:$0xff]
  %s147 = scalar_lea.vmem %s1, 288
  %148 = vst [vmem:[%s147] sm:$0xff] %v146
  %s149 = scalar_lea.vmem %s0, 704
  %v150 = vld [vmem:[%s149] sm:$0xff]
  %s151 = scalar_lea.vmem %s1, 736
  %152 = vst [vmem:[%s151] sm:$0xff] %v150
  %s153 = scalar_lea.vmem %s0, 368
  %v154 = vld [vmem:[%s153] sm:$0xff]
  %s155 = scalar_lea.vmem %s1, 400
  %156 = vst [vmem:[%s155] sm:$0xff] %v154
  %s157 = scalar_lea.vmem %s0, 816
  %v158 = vld [vmem:[%s157] sm:$0xff]
  %s159 = scalar_lea.vmem %s1, 848
  %160 = vst [vmem:[%s159] sm:$0xff] %v158
  %s161 = scalar_lea.vmem %s0, 16
  %v162 = vld [vmem:[%s161] sm:$0xff]
  %s163 = scalar_lea.vmem %s1, 80
  %164 = vst [vmem:[%s163] sm:$0xff] %v162
  %s165 = scalar_lea.vmem %s0, 464
  %v166 = vld [vmem:[%s165] sm:$0xff]
  %s167 = scalar_lea.vmem %s1, 528
  %168 = vst [vmem:[%s167] sm:$0xff] %v166
  %s169 = scalar_lea.vmem %s0, 128
  %v170 = vld [vmem:[%s169] sm:$0xff]
  %s171 = scalar_lea.vmem %s1, 192
  %172 = vst [vmem:[%s171] sm:$0xff] %v170
  %s173 = scalar_lea.vmem %s0, 576
  %v174 = vld [vmem:[%s173] sm:$0xff]
  %s175 = scalar_lea.vmem %s1, 640
  %176 = vst [vmem:[%s175] sm:$0xff] %v174
  %s177 = scalar_lea.vmem %s0, 240
  %v178 = vld [vmem:[%s177] sm:$0xff]
  %s179 = scalar_lea.vmem %s1, 304
  %180 = vst [vmem:[%s179] sm:$0xff] %v178
  %s181 = scalar_lea.vmem %s0, 688
  %v182 = vld [vmem:[%s181] sm:$0xff]
  %s183 = scalar_lea.vmem %s1, 752
  %184 = vst [vmem:[%s183] sm:$0xff] %v182
  %s185 = scalar_lea.vmem %s0, 352
  %v186 = vld [vmem:[%s185] sm:$0xff]
  %s187 = scalar_lea.vmem %s1, 416
  %188 = vst [vmem:[%s187] sm:$0xff] %v186
  %s189 = scalar_lea.vmem %s0, 800
  %v190 = vld [vmem:[%s189] sm:$0xff]
  %s191 = scalar_lea.vmem %s1, 864
  %192 = vst [vmem:[%s191] sm:$0xff] %v190
  %v193 = vld [vmem:[%s0] sm:$0xff]
  %s194 = scalar_lea.vmem %s1, 96
  %195 = vst [vmem:[%s194] sm:$0xff] %v193
  %s196 = scalar_lea.vmem %s0, 448
  %v197 = vld [vmem:[%s196] sm:$0xff]
  %s198 = scalar_lea.vmem %s1, 544
  %199 = vst [vmem:[%s198] sm:$0xff] %v197
  %s200 = scalar_lea.vmem %s0, 112
  %v201 = vld [vmem:[%s200] sm:$0xff]
  %s202 = scalar_lea.vmem %s1, 208
  %203 = vst [vmem:[%s202] sm:$0xff] %v201
  %s204 = scalar_lea.vmem %s0, 560
  %v205 = vld [vmem:[%s204] sm:$0xff]
  %s206 = scalar_lea.vmem %s1, 656
  %207 = vst [vmem:[%s206] sm:$0xff] %v205
  %s208 = scalar_lea.vmem %s0, 224
  %v209 = vld [vmem:[%s208] sm:$0xff]
  %s210 = scalar_lea.vmem %s1, 320
  %211 = vst [vmem:[%s210] sm:$0xff] %v209
  %s212 = scalar_lea.vmem %s0, 672
  %v213 = vld [vmem:[%s212] sm:$0xff]
  %s214 = scalar_lea.vmem %s1, 768
  %215 = vst [vmem:[%s214] sm:$0xff] %v213
  %s216 = scalar_lea.vmem %s0, 336
  %v217 = vld [vmem:[%s216] sm:$0xff]
  %s218 = scalar_lea.vmem %s1, 432
  %219 = vst [vmem:[%s218] sm:$0xff] %v217
  %s220 = scalar_lea.vmem %s0, 784
  %v221 = vld [vmem:[%s220] sm:$0xff]
  %s222 = scalar_lea.vmem %s1, 880
  %223 = vst [vmem:[%s222] sm:$0xff] %v221
  %s224 = scalar_lea.vmem %s0, 104
  %v225 = vld [vmem:[%s224] sm:$0xff]
  %s226 = scalar_lea.vmem %s1, 8
  %227 = vst [vmem:[%s226] sm:$0xff] %v225
  %s228 = scalar_lea.vmem %s0, 552
  %v229 = vld [vmem:[%s228] sm:$0xff]
  %s230 = scalar_lea.vmem %s1, 456
  %231 = vst [vmem:[%s230] sm:$0xff] %v229
  %s232 = scalar_lea.vmem %s0, 216
  %v233 = vld [vmem:[%s232] sm:$0xff]
  %s234 = scalar_lea.vmem %s1, 120
  %235 = vst [vmem:[%s234] sm:$0xff] %v233
  %s236 = scalar_lea.vmem %s0, 664
  %v237 = vld [vmem:[%s236] sm:$0xff]
  %s238 = scalar_lea.vmem %s1, 568
  %239 = vst [vmem:[%s238] sm:$0xff] %v237
  %s240 = scalar_lea.vmem %s0, 328
  %v241 = vld [vmem:[%s240] sm:$0xff]
  %s242 = scalar_lea.vmem %s1, 232
  %243 = vst [vmem:[%s242] sm:$0xff] %v241
  %s244 = scalar_lea.vmem %s0, 776
  %v245 = vld [vmem:[%s244] sm:$0xff]
  %s246 = scalar_lea.vmem %s1, 680
  %247 = vst [vmem:[%s246] sm:$0xff] %v245
  %s248 = scalar_lea.vmem %s0, 440
  %v249 = vld [vmem:[%s248] sm:$0xff]
  %s250 = scalar_lea.vmem %s1, 344
  %251 = vst [vmem:[%s250] sm:$0xff] %v249
  %s252 = scalar_lea.vmem %s0, 888
  %v253 = vld [vmem:[%s252] sm:$0xff]
  %s254 = scalar_lea.vmem %s1, 792
  %255 = vst [vmem:[%s254] sm:$0xff] %v253
  %s256 = scalar_lea.vmem %s0, 88
  %v257 = vld [vmem:[%s256] sm:$0xff]
  %s258 = scalar_lea.vmem %s1, 24
  %259 = vst [vmem:[%s258] sm:$0xff] %v257
  %s260 = scalar_lea.vmem %s0, 536
  %v261 = vld [vmem:[%s260] sm:$0xff]
  %s262 = scalar_lea.vmem %s1, 472
  %263 = vst [vmem:[%s262] sm:$0xff] %v261
  %s264 = scalar_lea.vmem %s0, 200
  %v265 = vld [vmem:[%s264] sm:$0xff]
  %s266 = scalar_lea.vmem %s1, 136
  %267 = vst [vmem:[%s266] sm:$0xff] %v265
  %s268 = scalar_lea.vmem %s0, 648
  %v269 = vld [vmem:[%s268] sm:$0xff]
  %s270 = scalar_lea.vmem %s1, 584
  %271 = vst [vmem:[%s270] sm:$0xff] %v269
  %s272 = scalar_lea.vmem %s0, 312
  %v273 = vld [vmem:[%s272] sm:$0xff]
  %s274 = scalar_lea.vmem %s1, 248
  %275 = vst [vmem:[%s274] sm:$0xff] %v273
  %s276 = scalar_lea.vmem %s0, 760
  %v277 = vld [vmem:[%s276] sm:$0xff]
  %s278 = scalar_lea.vmem %s1, 696
  %279 = vst [vmem:[%s278] sm:$0xff] %v277
  %s280 = scalar_lea.vmem %s0, 424
  %v281 = vld [vmem:[%s280] sm:$0xff]
  %s282 = scalar_lea.vmem %s1, 360
  %283 = vst [vmem:[%s282] sm:$0xff] %v281
  %s284 = scalar_lea.vmem %s0, 872
  %v285 = vld [vmem:[%s284] sm:$0xff]
  %s286 = scalar_lea.vmem %s1, 808
  %287 = vst [vmem:[%s286] sm:$0xff] %v285
  %s288 = scalar_lea.vmem %s0, 72
  %v289 = vld [vmem:[%s288] sm:$0xff]
  %s290 = scalar_lea.vmem %s1, 40
  %291 = vst [vmem:[%s290] sm:$0xff] %v289
  %s292 = scalar_lea.vmem %s0, 520
  %v293 = vld [vmem:[%s292] sm:$0xff]
  %s294 = scalar_lea.vmem %s1, 488
  %295 = vst [vmem:[%s294] sm:$0xff] %v293
  %s296 = scalar_lea.vmem %s0, 184
  %v297 = vld [vmem:[%s296] sm:$0xff]
  %s298 = scalar_lea.vmem %s1, 152
  %299 = vst [vmem:[%s298] sm:$0xff] %v297
  %s300 = scalar_lea.vmem %s0, 632
  %v301 = vld [vmem:[%s300] sm:$0xff]
  %s302 = scalar_lea.vmem %s1, 600
  %303 = vst [vmem:[%s302] sm:$0xff] %v301
  %s304 = scalar_lea.vmem %s0, 296
  %v305 = vld [vmem:[%s304] sm:$0xff]
  %s306 = scalar_lea.vmem %s1, 264
  %307 = vst [vmem:[%s306] sm:$0xff] %v305
  %s308 = scalar_lea.vmem %s0, 744
  %v309 = vld [vmem:[%s308] sm:$0xff]
  %s310 = scalar_lea.vmem %s1, 712
  %311 = vst [vmem:[%s310] sm:$0xff] %v309
  %s312 = scalar_lea.vmem %s0, 408
  %v313 = vld [vmem:[%s312] sm:$0xff]
  %s314 = scalar_lea.vmem %s1, 376
  %315 = vst [vmem:[%s314] sm:$0xff] %v313
  %s316 = scalar_lea.vmem %s0, 856
  %v317 = vld [vmem:[%s316] sm:$0xff]
  %s318 = scalar_lea.vmem %s1, 824
  %319 = vst [vmem:[%s318] sm:$0xff] %v317
  %s320 = scalar_lea.vmem %s0, 56
  %v321 = vld [vmem:[%s320] sm:$0xff]
  %s322 = scalar_lea.vmem %s1, 56
  %323 = vst [vmem:[%s322] sm:$0xff] %v321
  %s324 = scalar_lea.vmem %s0, 504
  %v325 = vld [vmem:[%s324] sm:$0xff]
  %s326 = scalar_lea.vmem %s1, 504
  %327 = vst [vmem:[%s326] sm:$0xff] %v325
  %s328 = scalar_lea.vmem %s0, 168
  %v329 = vld [vmem:[%s328] sm:$0xff]
  %s330 = scalar_lea.vmem %s1, 168
  %331 = vst [vmem:[%s330] sm:$0xff] %v329
  %s332 = scalar_lea.vmem %s0, 616
  %v333 = vld [vmem:[%s332] sm:$0xff]
  %s334 = scalar_lea.vmem %s1, 616
  %335 = vst [vmem:[%s334] sm:$0xff] %v333
  %s336 = scalar_lea.vmem %s0, 280
  %v337 = vld [vmem:[%s336] sm:$0xff]
  %s338 = scalar_lea.vmem %s1, 280
  %339 = vst [vmem:[%s338] sm:$0xff] %v337
  %s340 = scalar_lea.vmem %s0, 728
  %v341 = vld [vmem:[%s340] sm:$0xff]
  %s342 = scalar_lea.vmem %s1, 728
  %343 = vst [vmem:[%s342] sm:$0xff] %v341
  %s344 = scalar_lea.vmem %s0, 392
  %v345 = vld [vmem:[%s344] sm:$0xff]
  %s346 = scalar_lea.vmem %s1, 392
  %347 = vst [vmem:[%s346] sm:$0xff] %v345
  %s348 = scalar_lea.vmem %s0, 840
  %v349 = vld [vmem:[%s348] sm:$0xff]
  %s350 = scalar_lea.vmem %s1, 840
  %351 = vst [vmem:[%s350] sm:$0xff] %v349
  %s352 = scalar_lea.vmem %s0, 40
  %v353 = vld [vmem:[%s352] sm:$0xff]
  %s354 = scalar_lea.vmem %s1, 72
  %355 = vst [vmem:[%s354] sm:$0xff] %v353
  %s356 = scalar_lea.vmem %s0, 488
  %v357 = vld [vmem:[%s356] sm:$0xff]
  %s358 = scalar_lea.vmem %s1, 520
  %359 = vst [vmem:[%s358] sm:$0xff] %v357
  %s360 = scalar_lea.vmem %s0, 152
  %v361 = vld [vmem:[%s360] sm:$0xff]
  %s362 = scalar_lea.vmem %s1, 184
  %363 = vst [vmem:[%s362] sm:$0xff] %v361
  %s364 = scalar_lea.vmem %s0, 600
  %v365 = vld [vmem:[%s364] sm:$0xff]
  %s366 = scalar_lea.vmem %s1, 632
  %367 = vst [vmem:[%s366] sm:$0xff] %v365
  %s368 = scalar_lea.vmem %s0, 264
  %v369 = vld [vmem:[%s368] sm:$0xff]
  %s370 = scalar_lea.vmem %s1, 296
  %371 = vst [vmem:[%s370] sm:$0xff] %v369
  %s372 = scalar_lea.vmem %s0, 712
  %v373 = vld [vmem:[%s372] sm:$0xff]
  %s374 = scalar_lea.vmem %s1, 744
  %375 = vst [vmem:[%s374] sm:$0xff] %v373
  %s376 = scalar_lea.vmem %s0, 376
  %v377 = vld [vmem:[%s376] sm:$0xff]
  %s378 = scalar_lea.vmem %s1, 408
  %379 = vst [vmem:[%s378] sm:$0xff] %v377
  %s380 = scalar_lea.vmem %s0, 824
  %v381 = vld [vmem:[%s380] sm:$0xff]
  %s382 = scalar_lea.vmem %s1, 856
  %383 = vst [vmem:[%s382] sm:$0xff] %v381
  %s384 = scalar_lea.vmem %s0, 24
  %v385 = vld [vmem:[%s384] sm:$0xff]
  %s386 = scalar_lea.vmem %s1, 88
  %387 = vst [vmem:[%s386] sm:$0xff] %v385
  %s388 = scalar_lea.vmem %s0, 472
  %v389 = vld [vmem:[%s388] sm:$0xff]
  %s390 = scalar_lea.vmem %s1, 536
  %391 = vst [vmem:[%s390] sm:$0xff] %v389
  %s392 = scalar_lea.vmem %s0, 136
  %v393 = vld [vmem:[%s392] sm:$0xff]
  %s394 = scalar_lea.vmem %s1, 200
  %395 = vst [vmem:[%s394] sm:$0xff] %v393
  %s396 = scalar_lea.vmem %s0, 584
  %v397 = vld [vmem:[%s396] sm:$0xff]
  %s398 = scalar_lea.vmem %s1, 648
  %399 = vst [vmem:[%s398] sm:$0xff] %v397
  %s400 = scalar_lea.vmem %s0, 248
  %v401 = vld [vmem:[%s400] sm:$0xff]
  %s402 = scalar_lea.vmem %s1, 312
  %403 = vst [vmem:[%s402] sm:$0xff] %v401
  %s404 = scalar_lea.vmem %s0, 696
  %v405 = vld [vmem:[%s404] sm:$0xff]
  %s406 = scalar_lea.vmem %s1, 760
  %407 = vst [vmem:[%s406] sm:$0xff] %v405
  %s408 = scalar_lea.vmem %s0, 360
  %v409 = vld [vmem:[%s408] sm:$0xff]
  %s410 = scalar_lea.vmem %s1, 424
  %411 = vst [vmem:[%s410] sm:$0xff] %v409
  %s412 = scalar_lea.vmem %s0, 808
  %v413 = vld [vmem:[%s412] sm:$0xff]
  %s414 = scalar_lea.vmem %s1, 872
  %415 = vst [vmem:[%s414] sm:$0xff] %v413
  %s416 = scalar_lea.vmem %s0, 8
  %v417 = vld [vmem:[%s416] sm:$0xff]
  %s418 = scalar_lea.vmem %s1, 104
  %419 = vst [vmem:[%s418] sm:$0xff] %v417
  %s420 = scalar_lea.vmem %s0, 456
  %v421 = vld [vmem:[%s420] sm:$0xff]
  %s422 = scalar_lea.vmem %s1, 552
  %423 = vst [vmem:[%s422] sm:$0xff] %v421
  %s424 = scalar_lea.vmem %s0, 120
  %v425 = vld [vmem:[%s424] sm:$0xff]
  %s426 = scalar_lea.vmem %s1, 216
  %427 = vst [vmem:[%s426] sm:$0xff] %v425
  %s428 = scalar_lea.vmem %s0, 568
  %v429 = vld [vmem:[%s428] sm:$0xff]
  %s430 = scalar_lea.vmem %s1, 664
  %431 = vst [vmem:[%s430] sm:$0xff] %v429
  %s432 = scalar_lea.vmem %s0, 232
  %v433 = vld [vmem:[%s432] sm:$0xff]
  %s434 = scalar_lea.vmem %s1, 328
  %435 = vst [vmem:[%s434] sm:$0xff] %v433
  %s436 = scalar_lea.vmem %s0, 680
  %v437 = vld [vmem:[%s436] sm:$0xff]
  %s438 = scalar_lea.vmem %s1, 776
  %439 = vst [vmem:[%s438] sm:$0xff] %v437
  %s440 = scalar_lea.vmem %s0, 344
  %v441 = vld [vmem:[%s440] sm:$0xff]
  %s442 = scalar_lea.vmem %s1, 440
  %443 = vst [vmem:[%s442] sm:$0xff] %v441
  %s444 = scalar_lea.vmem %s0, 792
  %v445 = vld [vmem:[%s444] sm:$0xff]
  %s446 = scalar_lea.vmem %s1, 888
  %447 = vst [vmem:[%s446] sm:$0xff] %v445

</llo_original>
